<compile_context>
chip_gen: v7x
topology: tpu7x:2x2x1
jax: 0.10.0
libtpu: 0.0.40
codegen_flags: <defaults>
</compile_context>

<pallas_src>
import functools

import numpy as np
import jax
import jax.numpy as jnp
from jax.experimental import pallas as pl
from jax.experimental.pallas import tpu as pltpu  # noqa: F401

SELU_ALPHA = 1.6732632423543772
SELU_SCALE = 1.0507009873554805


def _selu(x):
    return SELU_SCALE * jnp.where(x > 0.0, x,
                                  SELU_ALPHA * (jnp.exp(jnp.minimum(x, 0.0)) - 1.0))


# ------------------------------ fused kernel --------------------------------

def _wormhole_fused_kernel(latent_ref, slab_ref, out_ref, *,
                           B, S, L, H, heads, out_dim, layers, offs):
    """Single-invocation fused forward.

    latent_ref: [B, L]; slab_ref: packed weight slab [R, >=128]; out_ref: [B*S, out_dim].
    All weight pieces inside the slab are [in, out]; biases are [1, out].
    """
    BS = B * S
    dh = H // heads
    scale = 1.0 / float(np.sqrt(dh))

    def piece(name, rows, cols):
        r0 = offs[name]                       # static python int, sublane-aligned
        return slab_ref[r0:r0 + rows, 0:cols]

    # ---- fused multiplier + .view + decoder[0] (Linear L->H), review item 1(a) ----
    latent = latent_ref[...]                                                    # [B, L]
    lat_rep = jnp.concatenate(
        [jnp.broadcast_to(latent[b:b + 1, :], (S, L)) for b in range(B)], axis=0)  # [BS, L]
    lat_tiled = jnp.concatenate([lat_rep] * S, axis=1)                          # [BS, S*L]
    # block-diag mask: row r keeps lane block (r % S); built without integer div.
    row_mod = jax.lax.broadcasted_iota(jnp.int32, (BS, S * L), 0) % S
    col_idx = jax.lax.broadcasted_iota(jnp.int32, (BS, S * L), 1)
    d = col_idx - row_mod * L
    lat_bd = jnp.where((d >= 0) & (d < L), lat_tiled, 0.0)                      # [BS, S*L]

    w_fused = piece("w_fused", S * L, H)                                        # [S*L, H]
    b_fused = piece("b_fused", S, H)                                            # [S, H]
    b_rows = jnp.concatenate([b_fused] * B, axis=0)        # row r -> b_fused[r % S], [BS, H]
    h = jnp.dot(lat_bd, w_fused, preferred_element_type=jnp.float32) + b_rows   # [BS, H]
    h = _selu(h)

    # additive block-diagonal batch mask for the folded-batch attention (review item 2)
    ri = jax.lax.broadcasted_iota(jnp.int32, (BS, BS), 0)
    ci = jax.lax.broadcasted_iota(jnp.int32, (BS, BS), 1)
    same_batch = (ri - ri % S) == (ci - ci % S)
    attn_bias = jnp.where(same_batch, 0.0, -1e30)                               # [BS, BS]

    eye_h = piece("eye", H, H)                                                  # [H, H]

    # TODO(synk): `SelfAttention` source was not provided with the module; assumed a
    # standard pre-projection multi-head scaled-dot-product attention (Wq/Wk/Wv/Wo,
    # 1/sqrt(head_dim) scaling, no residual / LayerNorm).
    for li in range(layers):
        wqkv = piece(f"wqkv_{li}", H, 3 * H)                                    # [H, 3H]
        bqkv = piece(f"bqkv_{li}", 1, 3 * H)                                    # [1, 3H]
        wo = piece(f"wo_{li}", H, H)                                            # [H, H]
        bo = piece(f"bo_{li}", 1, H)                                            # [1, H]

        # fused QKV projection on the whole [BS, H] slab (batch folded into sublanes)
        qkv = jnp.dot(h, wqkv, preferred_element_type=jnp.float32) + bqkv       # [BS, 3H]

        # hoisted K transpose (review item 4): one NT matmul vs. identity per layer,
        # then per-head K slices become cheap sublane slices of kT.
        kT = jax.lax.dot_general(eye_h, qkv[:, H:2 * H], (((1,), (1,)), ((), ())),
                                 preferred_element_type=jnp.float32)            # [H, BS]

        head_outs = []
        for hd in range(heads):                                 # static, tiny (heads iters)
            c0 = hd * dh
            q_h = qkv[:, c0:c0 + dh]                                            # [BS, dh]
            kT_h = kT[c0:c0 + dh, :]                                            # [dh, BS]
            v_h = qkv[:, 2 * H + c0:2 * H + c0 + dh]                            # [BS, dh]
            s_h = jnp.dot(q_h, kT_h, preferred_element_type=jnp.float32) * scale
            s_h = s_h + attn_bias                                               # [BS, BS]
            s_h = s_h - jnp.max(s_h, axis=-1, keepdims=True)
            p = jnp.exp(s_h)
            p = p / jnp.sum(p, axis=-1, keepdims=True)          # exact divide (parity)
            head_outs.append(jnp.dot(p, v_h, preferred_element_type=jnp.float32))
        o_cat = jnp.concatenate(head_outs, axis=1)                              # [BS, H]
        # single output projection per layer (review item 3)
        h = jnp.dot(o_cat, wo, preferred_element_type=jnp.float32) + bo

    # ---- decoder[-1]: Linear(hidden_dim, out_dim) ----
    w_out = piece("dec_out_w", H, out_dim)
    b_out = piece("dec_out_b", 1, out_dim)
    out = jnp.dot(h, w_out, preferred_element_type=jnp.float32) + b_out
    out_ref[...] = out.astype(out_ref.dtype)


# --------------------------- parameter construction -------------------------

def _init_linear(key, out_dim, in_dim):
    """PyTorch nn.Linear default init, returns PyTorch-layout [out, in] weight + [out] bias."""
    kw, kb = jax.random.split(key)
    bound = 1.0 / np.sqrt(in_dim)
    w = jax.random.uniform(kw, (out_dim, in_dim), jnp.float32, -bound, bound)
    b = jax.random.uniform(kb, (out_dim,), jnp.float32, -bound, bound)
    return w, b


def _pack_slab(pieces):
    """Pack named 2-D arrays into one sublane-aligned [rows, >=128-lane] f32 slab.

    One operand => one HBM->VMEM DMA (review item 5). Returns (slab, {name: row_off})."""
    max_cols = max(int(a.shape[1]) for _, a in pieces)
    width = max(128, int(np.ceil(max_cols / 128.0)) * 128)
    offs, r = {}, 0
    for name, a in pieces:
        offs[name] = r
        r += int(np.ceil(a.shape[0] / 8.0)) * 8          # keep every offset 8-aligned
    slab = np.zeros((r, width), np.float32)
    for name, a in pieces:
        a = np.asarray(a, np.float32)
        slab[offs[name]:offs[name] + a.shape[0], :a.shape[1]] = a
    return jnp.asarray(slab), offs


def init_wormhole_params(key, latent_dim, data_shape, hidden_dim, set_size,
                         layers=1, heads=4):
    assert hidden_dim % heads == 0, "hidden_dim must be divisible by heads"
    out_dim = int(np.prod(data_shape))
    L, H, S = latent_dim, hidden_dim, set_size
    keys = jax.random.split(key, 3 + layers)

    raw = dict(set_size=S, heads=heads, hidden_dim=H, out_dim=out_dim,
               layers=layers, latent_dim=L)

    mult_w, mult_b = _init_linear(keys[0], L * S, L)          # [S*L, L], [S*L]
    dec_in_w, dec_in_b = _init_linear(keys[1], H, L)          # [H, L],   [H]
    raw.update(mult_w=mult_w, mult_b=mult_b, dec_in_w=dec_in_w, dec_in_b=dec_in_b)

    # --- algebraic fusion of multiplier + .view + decoder[0] (one-time, f64) ---
    M = np.asarray(mult_w, np.float64).T                      # [L, S*L]
    D = np.asarray(dec_in_w, np.float64).T                    # [L, H]
    W_fused = np.concatenate([M[:, s * L:(s + 1) * L] @ D for s in range(S)], axis=0)  # [S*L, H]
    b_fused = (np.asarray(mult_b, np.float64).reshape(S, L) @ D
               + np.asarray(dec_in_b, np.float64)[None, :])                            # [S, H]

    pieces = [("w_fused", W_fused.astype(np.float32)),
              ("b_fused", b_fused.astype(np.float32)),
              ("eye", np.eye(H, dtype=np.float32))]

    raw["attn"] = []
    for i in range(layers):
        k = jax.random.split(keys[2 + i], 4)
        wq, bq = _init_linear(k[0], H, H)
        wk, bk = _init_linear(k[1], H, H)
        wv, bv = _init_linear(k[2], H, H)
        wo, bo = _init_linear(k[3], H, H)
        raw["attn"].append(dict(wq=wq, bq=bq, wk=wk, bk=bk, wv=wv, bv=bv, wo=wo, bo=bo))
        wqkv = np.concatenate([np.asarray(wq).T, np.asarray(wk).T, np.asarray(wv).T], axis=1)
        bqkv = np.concatenate([np.asarray(bq), np.asarray(bk), np.asarray(bv)]).reshape(1, -1)
        pieces += [(f"wqkv_{i}", wqkv),                       # [H, 3H] fused QKV
                   (f"bqkv_{i}", bqkv),                       # [1, 3H]
                   (f"wo_{i}", np.asarray(wo).T),             # [H, H]
                   (f"bo_{i}", np.asarray(bo).reshape(1, -1))]

    dec_out_w, dec_out_b = _init_linear(keys[-1], out_dim, H)
    raw.update(dec_out_w=dec_out_w, dec_out_b=dec_out_b)
    pieces += [("dec_out_w", np.asarray(dec_out_w).T),        # [H, out_dim]
               ("dec_out_b", np.asarray(dec_out_b).reshape(1, -1))]

    slab, offs = _pack_slab(pieces)
    return dict(slab=slab, offs=offs, set_size=S, heads=heads, hidden_dim=H,
                out_dim=out_dim, layers=layers, latent_dim=L, raw=raw)


# ------------------------------- forward pass --------------------------------

def wormhole_generator_forward(latent, params):
    """WormholeGenerator.forward == DistributionDecoderTx.forward(latent).
    One fused gridless pallas_call; only a trivial output reshape happens outside."""
    B, L = latent.shape
    assert L == params["latent_dim"]
    S = params["set_size"]
    H = params["hidden_dim"]
    heads = params["heads"]
    out_dim = params["out_dim"]
    layers = params["layers"]

    kernel = functools.partial(_wormhole_fused_kernel, B=B, S=S, L=L, H=H, heads=heads,
                               out_dim=out_dim, layers=layers, offs=params["offs"])
    # Gridless: the packed ~100 KiB weight slab + [B, L] latent live whole in VMEM.
    # A v7x grid=(B,) two-TensorCore split only pays off once per-core compute exceeds
    # the ~0.35us/step overhead — not at B=2/S=8 (review guidance).
    out = pl.pallas_call(
        kernel,
        out_shape=jax.ShapeDtypeStruct((B * S, out_dim), jnp.float32),
    )(latent, params["slab"])
    return out.reshape(B, S, out_dim)


# ------------------------- pure-numpy reference (f64) ------------------------

def _reference_forward(latent, raw):
    lat = np.asarray(latent, np.float64)
    B, L = lat.shape
    S, H, heads = raw["set_size"], raw["hidden_dim"], raw["heads"]
    dh = H // heads

    def lin(x, w, b):
        return x @ np.asarray(w, np.float64).T + np.asarray(b, np.float64)

    def selu(x):
        return SELU_SCALE * np.where(x > 0, x, SELU_ALPHA * (np.exp(np.minimum(x, 0.0)) - 1.0))

    full = lin(lat, raw["mult_w"], raw["mult_b"])                 # [B, S*L]
    x = full.reshape(B, S, L)
    h = selu(lin(x, raw["dec_in_w"], raw["dec_in_b"]))            # [B, S, H]
    for lp in raw["attn"]:
        q = lin(h, lp["wq"], lp["bq"]).reshape(B, S, heads, dh).transpose(0, 2, 1, 3)
        k = lin(h, lp["wk"], lp["bk"]).reshape(B, S, heads, dh).transpose(0, 2, 1, 3)
        v = lin(h, lp["wv"], lp["bv"]).reshape(B, S, heads, dh).transpose(0, 2, 1, 3)
        s = q @ k.transpose(0, 1, 3, 2) / np.sqrt(dh)
        s = s - s.max(axis=-1, keepdims=True)
        p = np.exp(s)
        p = p / p.sum(axis=-1, keepdims=True)
        o = (p @ v).transpose(0, 2, 1, 3).reshape(B, S, H)
        h = lin(o, lp["wo"], lp["bo"])
    return lin(h, raw["dec_out_w"], raw["dec_out_b"])             # [B, S, out_dim]


# ---------------------------------- main -------------------------------------

if __name__ == "__main__":
    latent_dim = 8
    data_shape = (4, 4)          # out_dim = 16
    hidden_dim = 32
    set_size = 8
    layers = 1
    heads = 4
    batch = 2

    key = jax.random.PRNGKey(0)
    k_param, k_latent = jax.random.split(key)
    params = init_wormhole_params(k_param, latent_dim, data_shape, hidden_dim,
                                  set_size, layers=layers, heads=heads)
    latent = jax.random.normal(k_latent, (batch, latent_dim), jnp.float32)

    out = wormhole_generator_forward(latent, params)
    out = jax.block_until_ready(out)
    assert out.shape == (batch, set_size, int(np.prod(data_shape))), out.shape
    assert jnp.all(jnp.isfinite(out))

    ref = _reference_forward(latent, params["raw"])
    max_err = float(np.max(np.abs(np.asarray(out, np.float64) - ref)))
    assert max_err < 5e-2, f"kernel/reference mismatch: max abs err {max_err}"
    print("KERNEL_OK")
</pallas_src>

<mosaic_0001>
module attributes {stable_mosaic.version = 11 : i64} {
  func.func @_wormhole_fused_kernel(%arg0: memref<2x8xf32, #tpu.memory_space<vmem>>, %arg1: memref<224x128xf32, #tpu.memory_space<vmem>>, %arg2: memref<16x16xf32, #tpu.memory_space<vmem>>) attributes {dimension_semantics = [], scalar_prefetch = 0 : i64, scratch_operands = 0 : i64, tpu.core_type = #tpu.core_type<tc>} {
    %c0 = arith.constant 0 : index
    %c0_0 = arith.constant 0 : index
    %0 = vector.load %arg0[%c0, %c0_0] : memref<2x8xf32, #tpu.memory_space<vmem>>, vector<2x8xf32>
    %1 = vector.extract_strided_slice %0 {offsets = [0, 0], sizes = [1, 8], strides = [1, 1]} : vector<2x8xf32> to vector<1x8xf32>
    %2 = vector.shape_cast %1 : vector<1x8xf32> to vector<1x8xf32>
    %3 = vector.broadcast %2 : vector<1x8xf32> to vector<8x8xf32>
    %4 = vector.extract_strided_slice %0 {offsets = [1, 0], sizes = [1, 8], strides = [1, 1]} : vector<2x8xf32> to vector<1x8xf32>
    %5 = vector.shape_cast %4 : vector<1x8xf32> to vector<1x8xf32>
    %6 = vector.broadcast %5 : vector<1x8xf32> to vector<8x8xf32>
    %7 = tpu.concatenate %3, %6 in 0 : vector<8x8xf32>, vector<8x8xf32> -> vector<16x8xf32>
    %8 = tpu.concatenate %7, %7, %7, %7, %7, %7, %7, %7 in 1 : vector<16x8xf32>, vector<16x8xf32>, vector<16x8xf32>, vector<16x8xf32>, vector<16x8xf32>, vector<16x8xf32>, vector<16x8xf32>, vector<16x8xf32> -> vector<16x64xf32>
    %9 = tpu.iota {dimensions = array<i32: 0>} : vector<16x64xi32>
    %c8_i32 = arith.constant 8 : i32
    %c0_i32 = arith.constant 0 : i32
    %10 = arith.cmpi eq, %c8_i32, %c0_i32 : i32
    %c1_i32 = arith.constant 1 : i32
    %11 = arith.select %10, %c1_i32, %c8_i32 : i32
    %12 = vector.broadcast %11 : i32 to vector<16x64xi32>
    %13 = arith.remsi %9, %12 : vector<16x64xi32>
    %c0_i32_1 = arith.constant 0 : i32
    %14 = vector.broadcast %c0_i32_1 : i32 to vector<16x64xi32>
    %15 = arith.cmpi ne, %13, %14 : vector<16x64xi32>
    %c0_i32_2 = arith.constant 0 : i32
    %16 = vector.broadcast %c0_i32_2 : i32 to vector<16x64xi32>
    %17 = arith.cmpi slt, %13, %16 : vector<16x64xi32>
    %c0_i32_3 = arith.constant 0 : i32
    %18 = arith.cmpi slt, %11, %c0_i32_3 : i32
    %19 = vector.broadcast %18 : i1 to vector<16x64xi1>
    %20 = vector.broadcast %19 : vector<16x64xi1> to vector<16x64xi1>
    %21 = arith.xori %17, %20 : vector<16x64xi1>
    %22 = arith.andi %21, %15 : vector<16x64xi1>
    %23 = vector.broadcast %11 : i32 to vector<16x64xi32>
    %24 = arith.addi %13, %23 : vector<16x64xi32>
    %25 = arith.select %22, %24, %13 : vector<16x64xi1>, vector<16x64xi32>
    %26 = tpu.iota {dimensions = array<i32: 1>} : vector<16x64xi32>
    %c8_i32_4 = arith.constant 8 : i32
    %27 = vector.broadcast %c8_i32_4 : i32 to vector<16x64xi32>
    %28 = arith.muli %25, %27 : vector<16x64xi32>
    %29 = arith.subi %26, %28 : vector<16x64xi32>
    %c0_i32_5 = arith.constant 0 : i32
    %30 = vector.broadcast %c0_i32_5 : i32 to vector<16x64xi32>
    %31 = arith.cmpi sge, %29, %30 : vector<16x64xi32>
    %c8_i32_6 = arith.constant 8 : i32
    %32 = vector.broadcast %c8_i32_6 : i32 to vector<16x64xi32>
    %33 = arith.cmpi slt, %29, %32 : vector<16x64xi32>
    %34 = arith.andi %31, %33 : vector<16x64xi1>
    %cst = arith.constant 0.000000e+00 : f32
    %35 = vector.broadcast %cst : f32 to vector<16x64xf32>
    %36 = arith.select %34, %8, %35 : vector<16x64xi1>, vector<16x64xf32>
    %c0_7 = arith.constant 0 : index
    %c0_8 = arith.constant 0 : index
    %37 = vector.load %arg1[%c0_7, %c0_8] : memref<224x128xf32, #tpu.memory_space<vmem>>, vector<64x32xf32>
    %c64 = arith.constant 64 : index
    %c0_9 = arith.constant 0 : index
    %38 = vector.load %arg1[%c64, %c0_9] : memref<224x128xf32, #tpu.memory_space<vmem>>, vector<8x32xf32>
    %39 = tpu.concatenate %38, %38 in 0 : vector<8x32xf32>, vector<8x32xf32> -> vector<16x32xf32>
    %cst_10 = arith.constant dense<0.000000e+00> : vector<16x32xf32>
    %40 = tpu.matmul %36, %37, %cst_10 {dimension_numbers = #tpu.dot_dimension_numbers<[1], [0], [0], [1], [0, 0, 1, 1], [], []>} : vector<16x64xf32>, vector<64x32xf32>, vector<16x32xf32> -> vector<16x32xf32>
    %41 = arith.addf %40, %39 : vector<16x32xf32>
    %cst_11 = arith.constant 0.000000e+00 : f32
    %42 = vector.broadcast %cst_11 : f32 to vector<16x32xf32>
    %43 = arith.cmpf ogt, %41, %42 : vector<16x32xf32>
    %cst_12 = arith.constant 0.000000e+00 : f32
    %44 = vector.broadcast %cst_12 : f32 to vector<16x32xf32>
    %45 = arith.minimumf %41, %44 : vector<16x32xf32>
    %46 = math.exp %45 : vector<16x32xf32>
    %cst_13 = arith.constant 1.000000e+00 : f32
    %47 = vector.broadcast %cst_13 : f32 to vector<16x32xf32>
    %48 = arith.subf %46, %47 : vector<16x32xf32>
    %cst_14 = arith.constant 1.67326319 : f32
    %49 = vector.broadcast %cst_14 : f32 to vector<16x32xf32>
    %50 = arith.mulf %49, %48 : vector<16x32xf32>
    %51 = arith.select %43, %41, %50 : vector<16x32xi1>, vector<16x32xf32>
    %cst_15 = arith.constant 1.05070102 : f32
    %52 = vector.broadcast %cst_15 : f32 to vector<16x32xf32>
    %53 = arith.mulf %52, %51 : vector<16x32xf32>
    %54 = tpu.iota {dimensions = array<i32: 0>} : vector<16x16xi32>
    %55 = tpu.iota {dimensions = array<i32: 1>} : vector<16x16xi32>
    %c8_i32_16 = arith.constant 8 : i32
    %c0_i32_17 = arith.constant 0 : i32
    %56 = arith.cmpi eq, %c8_i32_16, %c0_i32_17 : i32
    %c1_i32_18 = arith.constant 1 : i32
    %57 = arith.select %56, %c1_i32_18, %c8_i32_16 : i32
    %58 = vector.broadcast %57 : i32 to vector<16x16xi32>
    %59 = arith.remsi %54, %58 : vector<16x16xi32>
    %c0_i32_19 = arith.constant 0 : i32
    %60 = vector.broadcast %c0_i32_19 : i32 to vector<16x16xi32>
    %61 = arith.cmpi ne, %59, %60 : vector<16x16xi32>
    %c0_i32_20 = arith.constant 0 : i32
    %62 = vector.broadcast %c0_i32_20 : i32 to vector<16x16xi32>
    %63 = arith.cmpi slt, %59, %62 : vector<16x16xi32>
    %c0_i32_21 = arith.constant 0 : i32
    %64 = arith.cmpi slt, %57, %c0_i32_21 : i32
    %65 = vector.broadcast %64 : i1 to vector<16x16xi1>
    %66 = vector.broadcast %65 : vector<16x16xi1> to vector<16x16xi1>
    %67 = arith.xori %63, %66 : vector<16x16xi1>
    %68 = arith.andi %67, %61 : vector<16x16xi1>
    %69 = vector.broadcast %57 : i32 to vector<16x16xi32>
    %70 = arith.addi %59, %69 : vector<16x16xi32>
    %71 = arith.select %68, %70, %59 : vector<16x16xi1>, vector<16x16xi32>
    %72 = arith.subi %54, %71 : vector<16x16xi32>
    %c8_i32_22 = arith.constant 8 : i32
    %c0_i32_23 = arith.constant 0 : i32
    %73 = arith.cmpi eq, %c8_i32_22, %c0_i32_23 : i32
    %c1_i32_24 = arith.constant 1 : i32
    %74 = arith.select %73, %c1_i32_24, %c8_i32_22 : i32
    %75 = vector.broadcast %74 : i32 to vector<16x16xi32>
    %76 = arith.remsi %55, %75 : vector<16x16xi32>
    %c0_i32_25 = arith.constant 0 : i32
    %77 = vector.broadcast %c0_i32_25 : i32 to vector<16x16xi32>
    %78 = arith.cmpi ne, %76, %77 : vector<16x16xi32>
    %c0_i32_26 = arith.constant 0 : i32
    %79 = vector.broadcast %c0_i32_26 : i32 to vector<16x16xi32>
    %80 = arith.cmpi slt, %76, %79 : vector<16x16xi32>
    %c0_i32_27 = arith.constant 0 : i32
    %81 = arith.cmpi slt, %74, %c0_i32_27 : i32
    %82 = vector.broadcast %81 : i1 to vector<16x16xi1>
    %83 = vector.broadcast %82 : vector<16x16xi1> to vector<16x16xi1>
    %84 = arith.xori %80, %83 : vector<16x16xi1>
    %85 = arith.andi %84, %78 : vector<16x16xi1>
    %86 = vector.broadcast %74 : i32 to vector<16x16xi32>
    %87 = arith.addi %76, %86 : vector<16x16xi32>
    %88 = arith.select %85, %87, %76 : vector<16x16xi1>, vector<16x16xi32>
    %89 = arith.subi %55, %88 : vector<16x16xi32>
    %90 = arith.cmpi eq, %72, %89 : vector<16x16xi32>
    %cst_28 = arith.constant 0.000000e+00 : f32
    %cst_29 = arith.constant -1.000000e+30 : f32
    %91 = vector.broadcast %cst_28 : f32 to vector<16x16xf32>
    %92 = vector.broadcast %cst_29 : f32 to vector<16x16xf32>
    %93 = arith.select %90, %91, %92 : vector<16x16xi1>, vector<16x16xf32>
    %c72 = arith.constant 72 : index
    %c0_30 = arith.constant 0 : index
    %94 = vector.load %arg1[%c72, %c0_30] : memref<224x128xf32, #tpu.memory_space<vmem>>, vector<32x32xf32>
    %c104 = arith.constant 104 : index
    %c0_31 = arith.constant 0 : index
    %95 = vector.load %arg1[%c104, %c0_31] : memref<224x128xf32, #tpu.memory_space<vmem>>, vector<32x96xf32>
    %c136 = arith.constant 136 : index
    %c0_32 = arith.constant 0 : index
    %96 = vector.load %arg1[%c136, %c0_32] : memref<224x128xf32, #tpu.memory_space<vmem>>, vector<1x96xf32>
    %c144 = arith.constant 144 : index
    %c0_33 = arith.constant 0 : index
    %97 = vector.load %arg1[%c144, %c0_33] : memref<224x128xf32, #tpu.memory_space<vmem>>, vector<32x32xf32>
    %c176 = arith.constant 176 : index
    %c0_34 = arith.constant 0 : index
    %98 = vector.load %arg1[%c176, %c0_34] : memref<224x128xf32, #tpu.memory_space<vmem>>, vector<1x32xf32>
    %cst_35 = arith.constant dense<0.000000e+00> : vector<16x96xf32>
    %99 = tpu.matmul %53, %95, %cst_35 {dimension_numbers = #tpu.dot_dimension_numbers<[1], [0], [0], [1], [0, 0, 1, 1], [], []>} : vector<16x32xf32>, vector<32x96xf32>, vector<16x96xf32> -> vector<16x96xf32>
    %100 = vector.broadcast %96 : vector<1x96xf32> to vector<16x96xf32>
    %101 = arith.addf %99, %100 : vector<16x96xf32>
    %102 = vector.extract_strided_slice %101 {offsets = [0, 32], sizes = [16, 32], strides = [1, 1]} : vector<16x96xf32> to vector<16x32xf32>
    %cst_36 = arith.constant dense<0.000000e+00> : vector<32x16xf32>
    %103 = tpu.matmul %94, %102, %cst_36 {dimension_numbers = #tpu.dot_dimension_numbers<[1], [1], [0], [0], [0, 0, 1, 0], [], []>} : vector<32x32xf32>, vector<16x32xf32>, vector<32x16xf32> -> vector<32x16xf32>
    %104 = vector.extract_strided_slice %101 {offsets = [0, 0], sizes = [16, 8], strides = [1, 1]} : vector<16x96xf32> to vector<16x8xf32>
    %105 = vector.extract_strided_slice %103 {offsets = [0, 0], sizes = [8, 16], strides = [1, 1]} : vector<32x16xf32> to vector<8x16xf32>
    %106 = vector.extract_strided_slice %101 {offsets = [0, 64], sizes = [16, 8], strides = [1, 1]} : vector<16x96xf32> to vector<16x8xf32>
    %cst_37 = arith.constant dense<0.000000e+00> : vector<16x16xf32>
    %107 = tpu.matmul %104, %105, %cst_37 {dimension_numbers = #tpu.dot_dimension_numbers<[1], [0], [0], [1], [0, 0, 1, 1], [], []>} : vector<16x8xf32>, vector<8x16xf32>, vector<16x16xf32> -> vector<16x16xf32>
    %cst_38 = arith.constant 0.353553385 : f32
    %108 = vector.broadcast %cst_38 : f32 to vector<16x16xf32>
    %109 = arith.mulf %107, %108 : vector<16x16xf32>
    %110 = arith.addf %109, %93 : vector<16x16xf32>
    %cst_39 = arith.constant dense<0xFF800000> : vector<16xf32>
    %111 = vector.multi_reduction <maximumf>, %110, %cst_39 [1] : vector<16x16xf32> to vector<16xf32>
    %112 = vector.shape_cast %111 : vector<16xf32> to vector<16x1xf32>
    %113 = vector.broadcast %112 : vector<16x1xf32> to vector<16x16xf32>
    %114 = arith.subf %110, %113 : vector<16x16xf32>
    %115 = math.exp %114 : vector<16x16xf32>
    %cst_40 = arith.constant dense<0.000000e+00> : vector<16xf32>
    %116 = vector.multi_reduction <add>, %115, %cst_40 [1] : vector<16x16xf32> to vector<16xf32>
    %117 = vector.shape_cast %116 : vector<16xf32> to vector<16x1xf32>
    %118 = vector.broadcast %117 : vector<16x1xf32> to vector<16x16xf32>
    %119 = arith.divf %115, %118 : vector<16x16xf32>
    %cst_41 = arith.constant dense<0.000000e+00> : vector<16x8xf32>
    %120 = tpu.matmul %119, %106, %cst_41 {dimension_numbers = #tpu.dot_dimension_numbers<[1], [0], [0], [1], [0, 0, 1, 1], [], []>} : vector<16x16xf32>, vector<16x8xf32>, vector<16x8xf32> -> vector<16x8xf32>
    %121 = vector.extract_strided_slice %101 {offsets = [0, 8], sizes = [16, 8], strides = [1, 1]} : vector<16x96xf32> to vector<16x8xf32>
    %122 = vector.extract_strided_slice %103 {offsets = [8, 0], sizes = [8, 16], strides = [1, 1]} : vector<32x16xf32> to vector<8x16xf32>
    %123 = vector.extract_strided_slice %101 {offsets = [0, 72], sizes = [16, 8], strides = [1, 1]} : vector<16x96xf32> to vector<16x8xf32>
    %cst_42 = arith.constant dense<0.000000e+00> : vector<16x16xf32>
    %124 = tpu.matmul %121, %122, %cst_42 {dimension_numbers = #tpu.dot_dimension_numbers<[1], [0], [0], [1], [0, 0, 1, 1], [], []>} : vector<16x8xf32>, vector<8x16xf32>, vector<16x16xf32> -> vector<16x16xf32>
    %cst_43 = arith.constant 0.353553385 : f32
    %125 = vector.broadcast %cst_43 : f32 to vector<16x16xf32>
    %126 = arith.mulf %124, %125 : vector<16x16xf32>
    %127 = arith.addf %126, %93 : vector<16x16xf32>
    %cst_44 = arith.constant dense<0xFF800000> : vector<16xf32>
    %128 = vector.multi_reduction <maximumf>, %127, %cst_44 [1] : vector<16x16xf32> to vector<16xf32>
    %129 = vector.shape_cast %128 : vector<16xf32> to vector<16x1xf32>
    %130 = vector.broadcast %129 : vector<16x1xf32> to vector<16x16xf32>
    %131 = arith.subf %127, %130 : vector<16x16xf32>
    %132 = math.exp %131 : vector<16x16xf32>
    %cst_45 = arith.constant dense<0.000000e+00> : vector<16xf32>
    %133 = vector.multi_reduction <add>, %132, %cst_45 [1] : vector<16x16xf32> to vector<16xf32>
    %134 = vector.shape_cast %133 : vector<16xf32> to vector<16x1xf32>
    %135 = vector.broadcast %134 : vector<16x1xf32> to vector<16x16xf32>
    %136 = arith.divf %132, %135 : vector<16x16xf32>
    %cst_46 = arith.constant dense<0.000000e+00> : vector<16x8xf32>
    %137 = tpu.matmul %136, %123, %cst_46 {dimension_numbers = #tpu.dot_dimension_numbers<[1], [0], [0], [1], [0, 0, 1, 1], [], []>} : vector<16x16xf32>, vector<16x8xf32>, vector<16x8xf32> -> vector<16x8xf32>
    %138 = vector.extract_strided_slice %101 {offsets = [0, 16], sizes = [16, 8], strides = [1, 1]} : vector<16x96xf32> to vector<16x8xf32>
    %139 = vector.extract_strided_slice %103 {offsets = [16, 0], sizes = [8, 16], strides = [1, 1]} : vector<32x16xf32> to vector<8x16xf32>
    %140 = vector.extract_strided_slice %101 {offsets = [0, 80], sizes = [16, 8], strides = [1, 1]} : vector<16x96xf32> to vector<16x8xf32>
    %cst_47 = arith.constant dense<0.000000e+00> : vector<16x16xf32>
    %141 = tpu.matmul %138, %139, %cst_47 {dimension_numbers = #tpu.dot_dimension_numbers<[1], [0], [0], [1], [0, 0, 1, 1], [], []>} : vector<16x8xf32>, vector<8x16xf32>, vector<16x16xf32> -> vector<16x16xf32>
    %cst_48 = arith.constant 0.353553385 : f32
    %142 = vector.broadcast %cst_48 : f32 to vector<16x16xf32>
    %143 = arith.mulf %141, %142 : vector<16x16xf32>
    %144 = arith.addf %143, %93 : vector<16x16xf32>
    %cst_49 = arith.constant dense<0xFF800000> : vector<16xf32>
    %145 = vector.multi_reduction <maximumf>, %144, %cst_49 [1] : vector<16x16xf32> to vector<16xf32>
    %146 = vector.shape_cast %145 : vector<16xf32> to vector<16x1xf32>
    %147 = vector.broadcast %146 : vector<16x1xf32> to vector<16x16xf32>
    %148 = arith.subf %144, %147 : vector<16x16xf32>
    %149 = math.exp %148 : vector<16x16xf32>
    %cst_50 = arith.constant dense<0.000000e+00> : vector<16xf32>
    %150 = vector.multi_reduction <add>, %149, %cst_50 [1] : vector<16x16xf32> to vector<16xf32>
    %151 = vector.shape_cast %150 : vector<16xf32> to vector<16x1xf32>
    %152 = vector.broadcast %151 : vector<16x1xf32> to vector<16x16xf32>
    %153 = arith.divf %149, %152 : vector<16x16xf32>
    %cst_51 = arith.constant dense<0.000000e+00> : vector<16x8xf32>
    %154 = tpu.matmul %153, %140, %cst_51 {dimension_numbers = #tpu.dot_dimension_numbers<[1], [0], [0], [1], [0, 0, 1, 1], [], []>} : vector<16x16xf32>, vector<16x8xf32>, vector<16x8xf32> -> vector<16x8xf32>
    %155 = vector.extract_strided_slice %101 {offsets = [0, 24], sizes = [16, 8], strides = [1, 1]} : vector<16x96xf32> to vector<16x8xf32>
    %156 = vector.extract_strided_slice %103 {offsets = [24, 0], sizes = [8, 16], strides = [1, 1]} : vector<32x16xf32> to vector<8x16xf32>
    %157 = vector.extract_strided_slice %101 {offsets = [0, 88], sizes = [16, 8], strides = [1, 1]} : vector<16x96xf32> to vector<16x8xf32>
    %cst_52 = arith.constant dense<0.000000e+00> : vector<16x16xf32>
    %158 = tpu.matmul %155, %156, %cst_52 {dimension_numbers = #tpu.dot_dimension_numbers<[1], [0], [0], [1], [0, 0, 1, 1], [], []>} : vector<16x8xf32>, vector<8x16xf32>, vector<16x16xf32> -> vector<16x16xf32>
    %cst_53 = arith.constant 0.353553385 : f32
    %159 = vector.broadcast %cst_53 : f32 to vector<16x16xf32>
    %160 = arith.mulf %158, %159 : vector<16x16xf32>
    %161 = arith.addf %160, %93 : vector<16x16xf32>
    %cst_54 = arith.constant dense<0xFF800000> : vector<16xf32>
    %162 = vector.multi_reduction <maximumf>, %161, %cst_54 [1] : vector<16x16xf32> to vector<16xf32>
    %163 = vector.shape_cast %162 : vector<16xf32> to vector<16x1xf32>
    %164 = vector.broadcast %163 : vector<16x1xf32> to vector<16x16xf32>
    %165 = arith.subf %161, %164 : vector<16x16xf32>
    %166 = math.exp %165 : vector<16x16xf32>
    %cst_55 = arith.constant dense<0.000000e+00> : vector<16xf32>
    %167 = vector.multi_reduction <add>, %166, %cst_55 [1] : vector<16x16xf32> to vector<16xf32>
    %168 = vector.shape_cast %167 : vector<16xf32> to vector<16x1xf32>
    %169 = vector.broadcast %168 : vector<16x1xf32> to vector<16x16xf32>
    %170 = arith.divf %166, %169 : vector<16x16xf32>
    %cst_56 = arith.constant dense<0.000000e+00> : vector<16x8xf32>
    %171 = tpu.matmul %170, %157, %cst_56 {dimension_numbers = #tpu.dot_dimension_numbers<[1], [0], [0], [1], [0, 0, 1, 1], [], []>} : vector<16x16xf32>, vector<16x8xf32>, vector<16x8xf32> -> vector<16x8xf32>
    %172 = tpu.concatenate %120, %137, %154, %171 in 1 : vector<16x8xf32>, vector<16x8xf32>, vector<16x8xf32>, vector<16x8xf32> -> vector<16x32xf32>
    %cst_57 = arith.constant dense<0.000000e+00> : vector<16x32xf32>
    %173 = tpu.matmul %172, %97, %cst_57 {dimension_numbers = #tpu.dot_dimension_numbers<[1], [0], [0], [1], [0, 0, 1, 1], [], []>} : vector<16x32xf32>, vector<32x32xf32>, vector<16x32xf32> -> vector<16x32xf32>
    %174 = vector.broadcast %98 : vector<1x32xf32> to vector<16x32xf32>
    %175 = arith.addf %173, %174 : vector<16x32xf32>
    %c184 = arith.constant 184 : index
    %c0_58 = arith.constant 0 : index
    %176 = vector.load %arg1[%c184, %c0_58] : memref<224x128xf32, #tpu.memory_space<vmem>>, vector<32x16xf32>
    %c216 = arith.constant 216 : index
    %c0_59 = arith.constant 0 : index
    %177 = vector.load %arg1[%c216, %c0_59] : memref<224x128xf32, #tpu.memory_space<vmem>>, vector<1x16xf32>
    %cst_60 = arith.constant dense<0.000000e+00> : vector<16x16xf32>
    %178 = tpu.matmul %175, %176, %cst_60 {dimension_numbers = #tpu.dot_dimension_numbers<[1], [0], [0], [1], [0, 0, 1, 1], [], []>} : vector<16x32xf32>, vector<32x16xf32>, vector<16x16xf32> -> vector<16x16xf32>
    %179 = vector.broadcast %177 : vector<1x16xf32> to vector<16x16xf32>
    %180 = arith.addf %178, %179 : vector<16x16xf32>
    %c0_61 = arith.constant 0 : index
    %c0_62 = arith.constant 0 : index
    %181 = vector.load %arg2[%c0_61, %c0_62] : memref<16x16xf32, #tpu.memory_space<vmem>>, vector<16x16xf32>
    tpu.vector_store %arg2[%c0_61, %c0_62], %180 {strides = array<i32>} : memref<16x16xf32, #tpu.memory_space<vmem>>, vector<16x16xf32>,
    return
  }
}

</mosaic_0001>

<llo_original>
// kernel: tpu_custom_call.1
$region0: #{tpu_custom_call.1}
  #allocation0 [shape = 'u32[]', space=smem, size = 0x4, offset = 0x4, fixed_abs, tag = 'smem constant byte address 0x4 - core index']
  #allocation1 [shape = 'u32[144,128]{1,0:T(1,128)}', space=vmem, size = 0x12000, scoped, tag = 'internal scratch']
  %s0 = inlined_call_operand.hbm [shape: f32[2,8], index: 0, kind: input, shape index: {}]
  %s1 = inlined_call_operand.hbm [shape: f32[224,128], index: 1, kind: input, shape index: {}]
  %s2 = inlined_call_operand.hbm [shape: f32[16,16], index: 2, kind: output, shape index: {}]
  %s3 = sld [smem:[#allocation0]]
  $region26: #{tpu_custom_call.1} parent=0
    _
  %s5 = ssub.s32 1, %s3
  %s6 = scalar_select 0, %s5, %s3
  $region1: #{tpu_custom_call.1} parent=0
    #allocation2 [shape = 'u8[1024]{0}', space=vmem, size = 0x400, scoped, tag = 'input window, operand 0, single buffered']
    #allocation3 [shape = 's32[1]{0}', space=sflag, size = 0x4, scoped, tag = 'scoped memory for tpu_custom_call.1']
    #allocation4 [shape = 's32[1]{0}', space=sflag, size = 0x4, scoped, tag = 'scoped memory for tpu_custom_call.1']
    #allocation5 [shape = 'u8[114688]{0}', space=vmem, size = 0x1c000, scoped, tag = 'input window, operand 1, single buffered']
    #allocation6 [shape = 's32[1]{0}', space=sflag, size = 0x4, scoped, tag = 'scoped memory for tpu_custom_call.1']
    #allocation7 [shape = 'u8[8192]{0}', space=vmem, size = 0x2000, scoped, tag = 'output window, operand 0, single buffered']
    %7 = vsyncpa [#allocation3], 0
    %8 = vsyncpa [#allocation6], 0
    %9 = vsyncpa [#allocation4], 0
    // Predicated region
    $region2: #{tpu_custom_call.1} parent=1 // pred_check
      _
    $region3: #{tpu_custom_call.1} parent=1 // pred_check_branch
      %11 = sbr.rel (0) target = $region5
    $region4: #{tpu_custom_call.1} parent=1 // pred_region
      %s13 = ssub.s32 32, 32
      %14 = vsyncadd [#allocation3], %s13
      %s16 = sshll.u32 [#allocation2], 4
      %s17 = int_to_ptr.vmem [resolvable:$true] %s16
      %19 = dma.hbm_to_vmem [thread:$0]  %s0, 32, %s17, [#allocation3]
    $region5: #{tpu_custom_call.1} parent=1 // pred_fallthru
      _
    // Predicated region
    $region6: #{tpu_custom_call.1} parent=1 // pred_check
      _
    $region7: #{tpu_custom_call.1} parent=1 // pred_check_branch
      %21 = sbr.rel (0) target = $region9
    $region8: #{tpu_custom_call.1} parent=1 // pred_region
      %s23 = ssub.s32 3584, 3584
      %24 = vsyncadd [#allocation6], %s23
      %s25 = sshll.u32 [#allocation5], 4
      %s26 = int_to_ptr.vmem [resolvable:$true] %s25
      %31 = dma.hbm_to_vmem [thread:$0]  %s1, 3584, %s26, [#allocation6], 128, 128, 8
    $region9: #{tpu_custom_call.1} parent=1 // pred_fallthru
      _
    // Predicated region
    $region10: #{tpu_custom_call.1} parent=1 // pred_check
      _
    $region11: #{tpu_custom_call.1} parent=1 // pred_check_branch
      %33 = sbr.rel (0) target = $region13
    $region12: #{tpu_custom_call.1} parent=1 // pred_region
      %34 = dma.done [#allocation3], 32
    $region13: #{tpu_custom_call.1} parent=1 // pred_fallthru
      _
    // Predicated region
    $region14: #{tpu_custom_call.1} parent=1 // pred_check
      _
    $region15: #{tpu_custom_call.1} parent=1 // pred_check_branch
      %36 = sbr.rel (0) target = $region17
    $region16: #{tpu_custom_call.1} parent=1 // pred_region
      %37 = dma.done [#allocation6], 3584
    $region17: #{tpu_custom_call.1} parent=1 // pred_fallthru
      _
    %v38 = vld [vmem:[#allocation2] sm:$0x3]
    %v39 = vlaneseq
    %v40 = vshrl.u32 %v39, 7
    %v41 = vsub.s32 0, %v40
    %v42 = vrot.slane %v38, %v41
    %v43 = vlaneseq
    %v44 = vshrl.u32 %v43, 7
    %v45 = vsub.s32 1, %v44
    %v46 = vrot.slane %v38, %v45
    %49 = vrot.lane.b32.xlu0 %v42, 8
    %v50 = vpop.permute.xlu0 %49
    %51 = vrot.lane.b32.xlu0 %v46, 8
    %v52 = vpop.permute.xlu0 %51
    %55 = vrot.lane.b32.xlu0 %v42, 16
    %v56 = vpop.permute.xlu0 %55
    %57 = vrot.lane.b32.xlu0 %v46, 16
    %v58 = vpop.permute.xlu0 %57
    %61 = vrot.lane.b32.xlu0 %v42, 24
    %v62 = vpop.permute.xlu0 %61
    %63 = vrot.lane.b32.xlu0 %v46, 24
    %v64 = vpop.permute.xlu0 %63
    %67 = vrot.lane.b32.xlu0 %v42, 32
    %v68 = vpop.permute.xlu0 %67
    %69 = vrot.lane.b32.xlu0 %v46, 32
    %v70 = vpop.permute.xlu0 %69
    %73 = vrot.lane.b32.xlu0 %v42, 40
    %v74 = vpop.permute.xlu0 %73
    %75 = vrot.lane.b32.xlu0 %v46, 40
    %v76 = vpop.permute.xlu0 %75
    %79 = vrot.lane.b32.xlu0 %v42, 48
    %v80 = vpop.permute.xlu0 %79
    %81 = vrot.lane.b32.xlu0 %v46, 48
    %v82 = vpop.permute.xlu0 %81
    %85 = vrot.lane.b32.xlu0 %v42, 56
    %v86 = vpop.permute.xlu0 %85
    %87 = vrot.lane.b32.xlu0 %v46, 56
    %v88 = vpop.permute.xlu0 %87
    %vm91 = vcmask 64512
    %v92 = vsel %vm91, %v42, %v50
    %v93 = vsel %vm91, %v46, %v52
    %vm94 = vcmask 130048
    %v95 = vsel %vm94, %v92, %v56
    %v96 = vsel %vm94, %v93, %v58
    %vm97 = vcmask 195584
    %v98 = vsel %vm97, %v95, %v62
    %v99 = vsel %vm97, %v96, %v64
    %vm100 = vcmask 261120
    %v101 = vsel %vm100, %v98, %v68
    %v102 = vsel %vm100, %v99, %v70
    %vm103 = vcmask 326656
    %v104 = vsel %vm103, %v101, %v74
    %v105 = vsel %vm103, %v102, %v76
    %vm106 = vcmask 392192
    %v107 = vsel %vm106, %v104, %v80
    %v108 = vsel %vm106, %v105, %v82
    %vm109 = vcmask 457728
    %v110 = vsel %vm109, %v107, %v86
    %v111 = vsel %vm109, %v108, %v88
    %v112 = vlaneseq
    %v113 = vshrl.u32 %v112, 7
    %v114 = vadd.s32 %v113, 8
    %vm115 = vcmp.lt.s32.totalorder %v113, 0
    %v116 = vsub.s32 0, %v113
    %v117 = vsel %vm115, %v116, %v113
    %v118 = vshrl.u32 %v117, 3
    %v119 = vand.u32 %v117, 7
    %v120 = vsub.s32 0, %v119
    %v121 = vsel %vm115, %v120, %v119
    %vm122 = vcmp.lt.s32.totalorder %v114, 0
    %v123 = vsub.s32 0, %v114
    %v124 = vsel %vm122, %v123, %v114
    %v125 = vshrl.u32 %v124, 3
    %v126 = vand.u32 %v124, 7
    %v127 = vsub.s32 0, %v126
    %v128 = vsel %vm122, %v127, %v126
    %vm129 = vcmp.ne.s32.totalorder %v121, 0
    %vm130 = vcmp.ne.s32.totalorder %v128, 0
    %vm131 = vcmp.lt.s32.totalorder %v121, 0
    %vm132 = vcmp.lt.s32.totalorder %v128, 0
    %vm133 = vmand %vm131, %vm129
    %vm134 = vmand %vm132, %vm130
    %v135 = vadd.s32 %v121, 8
    %v136 = vadd.s32 %v128, 8
    %v137 = vsel %vm133, %v135, %v121
    %v138 = vsel %vm134, %v136, %v128
    %v139 = vlaneseq
    %v140 = vand.u32 %v139, 127
    %v141 = vmul.u32 %v137, 8
    %v142 = vmul.u32 %v138, 8
    %v143 = vsub.s32 %v140, %v141
    %v144 = vsub.s32 %v140, %v142
    %vm145 = vcmp.ge.s32.totalorder %v143, 0
    %vm146 = vcmp.ge.s32.totalorder %v144, 0
    %vm147 = vcmp.lt.s32.totalorder %v143, 8
    %vm148 = vcmp.lt.s32.totalorder %v144, 8
    %vm149 = vmand %vm145, %vm147
    %vm150 = vmand %vm146, %vm148
    %v151 = vsel %vm149, %v110, 0.0
    %v152 = vsel %vm150, %v111, 0.0
    %v153 = vld [vmem:[#allocation5] sm:$0xff]
    %v154 = vld [vmem:[#allocation5 + $0x8] sm:$0xff]
    %v155 = vld [vmem:[#allocation5 + $0x10] sm:$0xff]
    %v156 = vld [vmem:[#allocation5 + $0x18] sm:$0xff]
    %v157 = vld [vmem:[#allocation5 + $0x20] sm:$0xff]
    %v158 = vld [vmem:[#allocation5 + $0x28] sm:$0xff]
    %v159 = vld [vmem:[#allocation5 + $0x30] sm:$0xff]
    %v160 = vld [vmem:[#allocation5 + $0x38] sm:$0xff]
    %v161 = vld [vmem:[#allocation5 + $0x40] sm:$0xff]
    %vm162 = vcmask 523264
    %v164 = vsel %vm162, %v151, 0
    %v167 = vsel %vm162, %v152, 0
    %169 = vmatprep.subr.mxu0 0.0
    %170 = vmatpush1.msra.mxu0 %v153
    %171 = vmatprep.subr.mxu0 0.0
    %172 = vmatpush1.msra.mxu0 %v154
    %173 = vmatprep.subr.mxu0 0.0
    %174 = vmatpush1.msra.mxu0 %v155
    %175 = vmatprep.subr.mxu0 0.0
    %176 = vmatpush1.msra.mxu0 %v156
    %177 = vmatprep.subr.mxu0 0.0
    %178 = vmatpush1.msra.mxu0 %v157
    %179 = vmatprep.subr.mxu0 0.0
    %180 = vmatpush1.msra.mxu0 %v158
    %181 = vmatprep.subr.mxu0 0.0
    %182 = vmatpush1.msra.mxu0 %v159
    %183 = vmatprep.subr.mxu0 0.0
    %184 = vmatpush1.msra.mxu0 %v160
    %185 = vmatprep.subr.mxu0 0.0
    %186 = vmatpush1.msra.mxu0 0.0
    %187 = vmatprep.subr.mxu0 0.0
    %188 = vmatpush1.msra.mxu0 0.0
    %189 = vmatprep.subr.mxu0 0.0
    %190 = vmatpush1.msra.mxu0 0.0
    %191 = vmatprep.subr.mxu0 0.0
    %192 = vmatpush1.msra.mxu0 0.0
    %193 = vmatprep.subr.mxu0 0.0
    %194 = vmatpush1.msra.mxu0 0.0
    %195 = vmatprep.subr.mxu0 0.0
    %196 = vmatpush1.msra.mxu0 0.0
    %197 = vmatprep.subr.mxu0 0.0
    %198 = vmatpush1.msra.mxu0 0.0
    %199 = vmatprep.subr.mxu0 0.0
    %200 = vmatpush1.msra.mxu0 0.0
    %201 = vmatprep.subr.mxu0 0.0
    %202 = vmatpush1.msra.mxu0 0.0
    %203 = vmatprep.subr.mxu0 0.0
    %204 = vmatpush1.msra.mxu0 0.0
    %205 = vmatprep.subr.mxu0 0.0
    %206 = vmatpush1.msra.mxu0 0.0
    %207 = vmatprep.subr.mxu0 0.0
    %208 = vmatpush1.msra.mxu0 0.0
    %209 = vmatprep.subr.mxu0 0.0
    %210 = vmatpush1.msra.mxu0 0.0
    %211 = vmatprep.subr.mxu0 0.0
    %212 = vmatpush1.msra.mxu0 0.0
    %213 = vmatprep.subr.mxu0 0.0
    %214 = vmatpush1.msra.mxu0 0.0
    %215 = vmatprep.subr.mxu0 0.0
    %216 = vmatpush1.msra.mxu0 0.0
    %217 = vmatprep.subr.mxu0 0.0
    %218 = vmatpush1.msra.mxu0 0.0
    %219 = vmatprep.subr.mxu0 0.0
    %220 = vmatpush1.msra.mxu0 0.0
    %221 = vmatprep.subr.mxu0 0.0
    %222 = vmatpush1.msra.mxu0 0.0
    %223 = vmatprep.subr.mxu0 0.0
    %224 = vmatpush1.msra.mxu0 0.0
    %225 = vmatprep.subr.mxu0 0.0
    %226 = vmatpush1.msra.mxu0 0.0
    %227 = vmatprep.subr.mxu0 0.0
    %228 = vmatpush1.msra.mxu0 0.0
    %229 = vmatprep.subr.mxu0 0.0
    %230 = vmatpush1.msra.mxu0 0.0
    %231 = vmatprep.subr.mxu0 0.0
    %232 = vmatpush1.msra.mxu0 0.0
    %233 = vmatprep.mubr.f32.mxu0 0.0
    %234 = vmatmul.mubr.f32.gmra.mrb[0].mxu0 %v164
    %v235 = vpop.f32.mrb[0].mxu0
    %v236 = vadd.f32 %v161, %v235
    %v237 = vpop.f32.mrb[0].mxu0
    %238 = vmatprep.mubr.f32.mxu0 0.0
    %239 = vmatmul.mubr.f32.gmra.mrb[0].mxu0 %v167
    %v240 = vpop.f32.mrb[0].mxu0
    %v241 = vadd.f32 %v161, %v240
    %v242 = vpop.f32.mrb[0].mxu0
    %243 = vdwg.mxu0
    %vm244 = vcmp.gt.f32.partialorder %v236, 0.0
    %vm245 = vcmp.gt.f32.partialorder %v241, 0.0
    %v246 = vmin.f32 %v236, 0.0
    %v247 = vmin.f32 %v241, 0.0
    %v248 = vmul.f32 %v246, 1.442695
    %v249 = vpow.pop %v248
    %v250 = vmul.f32 %v247, 1.442695
    %v251 = vpow.pop %v250
    %v252 = vsub.f32 %v249, 1.0
    %v253 = vsub.f32 %v251, 1.0
    %v254 = vmul.f32 %v252, 1.6732632
    %v255 = vmul.f32 %v253, 1.6732632
    %v256 = vsel %vm244, %v236, %v254
    %v257 = vsel %vm245, %v241, %v255
    %v258 = vmul.f32 %v256, 1.050701
    %v259 = vmul.f32 %v257, 1.050701
    %v260 = vsub.s32 %v113, %v137
    %v261 = vsub.s32 %v114, %v138
    %vm262 = vcmp.lt.s32.totalorder %v140, 0
    %v263 = vsub.s32 0, %v140
    %v264 = vsel %vm262, %v263, %v140
    %v265 = vshrl.u32 %v264, 3
    %v266 = vand.u32 %v264, 7
    %v267 = vsub.s32 0, %v266
    %v268 = vsel %vm262, %v267, %v266
    %vm269 = vcmp.ne.s32.totalorder %v268, 0
    %vm270 = vcmp.lt.s32.totalorder %v268, 0
    %vm271 = vmand %vm270, %vm269
    %v272 = vadd.s32 %v268, 8
    %v273 = vsel %vm271, %v272, %v268
    %v274 = vsub.s32 %v140, %v273
    %vm275 = vcmp.eq.s32.totalorder %v260, %v274
    %vm276 = vcmp.eq.s32.totalorder %v261, %v274
    %v277 = vsel %vm275, 0.0, -1e+30
    %v278 = vsel %vm276, 0.0, -1e+30
    %v279 = vld [vmem:[#allocation5 + $0x48] sm:$0xff]
    %v280 = vld [vmem:[#allocation5 + $0x50] sm:$0xff]
    %v281 = vld [vmem:[#allocation5 + $0x58] sm:$0xff]
    %v282 = vld [vmem:[#allocation5 + $0x60] sm:$0xff]
    %v283 = vld [vmem:[#allocation5 + $0x68] sm:$0xff]
    %v284 = vld [vmem:[#allocation5 + $0x70] sm:$0xff]
    %v285 = vld [vmem:[#allocation5 + $0x78] sm:$0xff]
    %v286 = vld [vmem:[#allocation5 + $0x80] sm:$0xff]
    %v287 = vld [vmem:[#allocation5 + $0x88] sm:$0x1]
    %v288 = vld [vmem:[#allocation5 + $0x90] sm:$0xff]
    %v289 = vld [vmem:[#allocation5 + $0x98] sm:$0xff]
    %v290 = vld [vmem:[#allocation5 + $0xa0] sm:$0xff]
    %v291 = vld [vmem:[#allocation5 + $0xa8] sm:$0xff]
    %v292 = vld [vmem:[#allocation5 + $0xb0] sm:$0x1]
    %v293 = vlaneseq
    %v294 = vshrl.u32 %v293, 7
    %v295 = vsub.s32 0, %v294
    %v296 = vrot.slane %v287, %v295
    %v298 = vsel %vm100, %v258, 0
    %v301 = vsel %vm100, %v259, 0
    %303 = vmatprep.subr.mxu0 0.0
    %304 = vmatpush1.msra.mxu0 %v283
    %305 = vmatprep.subr.mxu0 0.0
    %306 = vmatpush1.msra.mxu0 %v284
    %307 = vmatprep.subr.mxu0 0.0
    %308 = vmatpush1.msra.mxu0 %v285
    %309 = vmatprep.subr.mxu0 0.0
    %310 = vmatpush1.msra.mxu0 %v286
    %311 = vmatprep.subr.mxu0 0.0
    %312 = vmatpush1.msra.mxu0 0.0
    %313 = vmatprep.subr.mxu0 0.0
    %314 = vmatpush1.msra.mxu0 0.0
    %315 = vmatprep.subr.mxu0 0.0
    %316 = vmatpush1.msra.mxu0 0.0
    %317 = vmatprep.subr.mxu0 0.0
    %318 = vmatpush1.msra.mxu0 0.0
    %319 = vmatprep.subr.mxu0 0.0
    %320 = vmatpush1.msra.mxu0 0.0
    %321 = vmatprep.subr.mxu0 0.0
    %322 = vmatpush1.msra.mxu0 0.0
    %323 = vmatprep.subr.mxu0 0.0
    %324 = vmatpush1.msra.mxu0 0.0
    %325 = vmatprep.subr.mxu0 0.0
    %326 = vmatpush1.msra.mxu0 0.0
    %327 = vmatprep.subr.mxu0 0.0
    %328 = vmatpush1.msra.mxu0 0.0
    %329 = vmatprep.subr.mxu0 0.0
    %330 = vmatpush1.msra.mxu0 0.0
    %331 = vmatprep.subr.mxu0 0.0
    %332 = vmatpush1.msra.mxu0 0.0
    %333 = vmatprep.subr.mxu0 0.0
    %334 = vmatpush1.msra.mxu0 0.0
    %335 = vmatprep.subr.mxu0 0.0
    %336 = vmatpush1.msra.mxu0 0.0
    %337 = vmatprep.subr.mxu0 0.0
    %338 = vmatpush1.msra.mxu0 0.0
    %339 = vmatprep.subr.mxu0 0.0
    %340 = vmatpush1.msra.mxu0 0.0
    %341 = vmatprep.subr.mxu0 0.0
    %342 = vmatpush1.msra.mxu0 0.0
    %343 = vmatprep.subr.mxu0 0.0
    %344 = vmatpush1.msra.mxu0 0.0
    %345 = vmatprep.subr.mxu0 0.0
    %346 = vmatpush1.msra.mxu0 0.0
    %347 = vmatprep.subr.mxu0 0.0
    %348 = vmatpush1.msra.mxu0 0.0
    %349 = vmatprep.subr.mxu0 0.0
    %350 = vmatpush1.msra.mxu0 0.0
    %351 = vmatprep.subr.mxu0 0.0
    %352 = vmatpush1.msra.mxu0 0.0
    %353 = vmatprep.subr.mxu0 0.0
    %354 = vmatpush1.msra.mxu0 0.0
    %355 = vmatprep.subr.mxu0 0.0
    %356 = vmatpush1.msra.mxu0 0.0
    %357 = vmatprep.subr.mxu0 0.0
    %358 = vmatpush1.msra.mxu0 0.0
    %359 = vmatprep.subr.mxu0 0.0
    %360 = vmatpush1.msra.mxu0 0.0
    %361 = vmatprep.subr.mxu0 0.0
    %362 = vmatpush1.msra.mxu0 0.0
    %363 = vmatprep.subr.mxu0 0.0
    %364 = vmatpush1.msra.mxu0 0.0
    %365 = vmatprep.subr.mxu0 0.0
    %366 = vmatpush1.msra.mxu0 0.0
    %367 = vmatprep.mubr.f32.mxu0 0.0
    %368 = vmatmul.mubr.f32.gmra.mrb[0].mxu0 %v298
    %v369 = vpop.f32.mrb[0].mxu0
    %v370 = vadd.f32 %v296, %v369
    %v371 = vpop.f32.mrb[0].mxu0
    %372 = vmatprep.mubr.f32.mxu0 0.0
    %373 = vmatmul.mubr.f32.gmra.mrb[0].mxu0 %v301
    %v374 = vpop.f32.mrb[0].mxu0
    %v375 = vadd.f32 %v296, %v374
    %v376 = vpop.f32.mrb[0].mxu0
    %377 = vdwg.mxu0
    %380 = vrot.lane.b32.xlu0 %v370, 96
    %v381 = vpop.permute.xlu0 %380
    %382 = vrot.lane.b32.xlu0 %v375, 96
    %v383 = vpop.permute.xlu0 %382
    %v385 = vsel %vm100, %v279, 0
    %v388 = vsel %vm100, %v280, 0
    %v391 = vsel %vm100, %v281, 0
    %v394 = vsel %vm100, %v282, 0
    %v396 = vsel %vm100, %v381, 0
    %v398 = vsel %vm100, %v383, 0
    %400 = vmatprep.subr.mxu0 0.0
    %401 = vmatpush1.xpose.msra.mxu0 %v396
    %402 = vmatprep.subr.mxu0 0.0
    %403 = vmatpush1.xpose.msra.mxu0 %v398
    %404 = vmatprep.subr.mxu0 0.0
    %405 = vmatpush1.xpose.msra.mxu0 0.0
    %406 = vmatprep.subr.mxu0 0.0
    %407 = vmatpush1.xpose.msra.mxu0 0.0
    %408 = vmatprep.subr.mxu0 0.0
    %409 = vmatpush1.xpose.msra.mxu0 0.0
    %410 = vmatprep.subr.mxu0 0.0
    %411 = vmatpush1.xpose.msra.mxu0 0.0
    %412 = vmatprep.subr.mxu0 0.0
    %413 = vmatpush1.xpose.msra.mxu0 0.0
    %414 = vmatprep.subr.mxu0 0.0
    %415 = vmatpush1.xpose.msra.mxu0 0.0
    %416 = vmatprep.subr.mxu0 0.0
    %417 = vmatpush1.xpose.msra.mxu0 0.0
    %418 = vmatprep.subr.mxu0 0.0
    %419 = vmatpush1.xpose.msra.mxu0 0.0
    %420 = vmatprep.subr.mxu0 0.0
    %421 = vmatpush1.xpose.msra.mxu0 0.0
    %422 = vmatprep.subr.mxu0 0.0
    %423 = vmatpush1.xpose.msra.mxu0 0.0
    %424 = vmatprep.subr.mxu0 0.0
    %425 = vmatpush1.xpose.msra.mxu0 0.0
    %426 = vmatprep.subr.mxu0 0.0
    %427 = vmatpush1.xpose.msra.mxu0 0.0
    %428 = vmatprep.subr.mxu0 0.0
    %429 = vmatpush1.xpose.msra.mxu0 0.0
    %430 = vmatprep.subr.mxu0 0.0
    %431 = vmatpush1.xpose.msra.mxu0 0.0
    %432 = vmatprep.subr.mxu0 0.0
    %433 = vmatpush1.xpose.msra.mxu0 0.0
    %434 = vmatprep.subr.mxu0 0.0
    %435 = vmatpush1.xpose.msra.mxu0 0.0
    %436 = vmatprep.subr.mxu0 0.0
    %437 = vmatpush1.xpose.msra.mxu0 0.0
    %438 = vmatprep.subr.mxu0 0.0
    %439 = vmatpush1.xpose.msra.mxu0 0.0
    %440 = vmatprep.subr.mxu0 0.0
    %441 = vmatpush1.xpose.msra.mxu0 0.0
    %442 = vmatprep.subr.mxu0 0.0
    %443 = vmatpush1.xpose.msra.mxu0 0.0
    %444 = vmatprep.subr.mxu0 0.0
    %445 = vmatpush1.xpose.msra.mxu0 0.0
    %446 = vmatprep.subr.mxu0 0.0
    %447 = vmatpush1.xpose.msra.mxu0 0.0
    %448 = vmatprep.subr.mxu0 0.0
    %449 = vmatpush1.xpose.msra.mxu0 0.0
    %450 = vmatprep.subr.mxu0 0.0
    %451 = vmatpush1.xpose.msra.mxu0 0.0
    %452 = vmatprep.subr.mxu0 0.0
    %453 = vmatpush1.xpose.msra.mxu0 0.0
    %454 = vmatprep.subr.mxu0 0.0
    %455 = vmatpush1.xpose.msra.mxu0 0.0
    %456 = vmatprep.subr.mxu0 0.0
    %457 = vmatpush1.xpose.msra.mxu0 0.0
    %458 = vmatprep.subr.mxu0 0.0
    %459 = vmatpush1.xpose.msra.mxu0 0.0
    %460 = vmatprep.subr.mxu0 0.0
    %461 = vmatpush1.xpose.msra.mxu0 0.0
    %462 = vmatprep.subr.mxu0 0.0
    %463 = vmatpush1.xpose.msra.mxu0 0.0
    %464 = vmatprep.mubr.f32.mxu0 0.0
    %465 = vmatmul.mubr.f32.gmra.mrb[0].mxu0 %v385
    %v466 = vpop.f32.mrb[0].mxu0
    %v467 = vadd.f32 0.0, %v466
    %v468 = vpop.f32.mrb[0].mxu0
    %469 = vmatprep.mubr.f32.mxu0 0.0
    %470 = vmatmul.mubr.f32.gmra.mrb[0].mxu0 %v388
    %v471 = vpop.f32.mrb[0].mxu0
    %v472 = vadd.f32 0.0, %v471
    %v473 = vpop.f32.mrb[0].mxu0
    %474 = vmatprep.mubr.f32.mxu0 0.0
    %475 = vmatmul.mubr.f32.gmra.mrb[0].mxu0 %v391
    %v476 = vpop.f32.mrb[0].mxu0
    %v477 = vadd.f32 0.0, %v476
    %v478 = vpop.f32.mrb[0].mxu0
    %479 = vmatprep.mubr.f32.mxu0 0.0
    %480 = vmatmul.mubr.f32.gmra.mrb[0].mxu0 %v394
    %v481 = vpop.f32.mrb[0].mxu0
    %v482 = vadd.f32 0.0, %v481
    %v483 = vpop.f32.mrb[0].mxu0
    %484 = vdwg.mxu0
    %v485 = vsel %vm91, %v370, 0
    %v487 = vsel %vm91, %v375, 0
    %489 = vmatprep.subr.mxu0 0.0
    %490 = vmatpush1.msra.mxu0 %v467
    %491 = vmatprep.subr.mxu0 0.0
    %492 = vmatpush1.msra.mxu0 0.0
    %493 = vmatprep.subr.mxu0 0.0
    %494 = vmatpush1.msra.mxu0 0.0
    %495 = vmatprep.subr.mxu0 0.0
    %496 = vmatpush1.msra.mxu0 0.0
    %497 = vmatprep.subr.mxu0 0.0
    %498 = vmatpush1.msra.mxu0 0.0
    %499 = vmatprep.subr.mxu0 0.0
    %500 = vmatpush1.msra.mxu0 0.0
    %501 = vmatprep.subr.mxu0 0.0
    %502 = vmatpush1.msra.mxu0 0.0
    %503 = vmatprep.subr.mxu0 0.0
    %504 = vmatpush1.msra.mxu0 0.0
    %505 = vmatprep.subr.mxu0 0.0
    %506 = vmatpush1.msra.mxu0 0.0
    %507 = vmatprep.subr.mxu0 0.0
    %508 = vmatpush1.msra.mxu0 0.0
    %509 = vmatprep.subr.mxu0 0.0
    %510 = vmatpush1.msra.mxu0 0.0
    %511 = vmatprep.subr.mxu0 0.0
    %512 = vmatpush1.msra.mxu0 0.0
    %513 = vmatprep.subr.mxu0 0.0
    %514 = vmatpush1.msra.mxu0 0.0
    %515 = vmatprep.subr.mxu0 0.0
    %516 = vmatpush1.msra.mxu0 0.0
    %517 = vmatprep.subr.mxu0 0.0
    %518 = vmatpush1.msra.mxu0 0.0
    %519 = vmatprep.subr.mxu0 0.0
    %520 = vmatpush1.msra.mxu0 0.0
    %521 = vmatprep.subr.mxu0 0.0
    %522 = vmatpush1.msra.mxu0 0.0
    %523 = vmatprep.subr.mxu0 0.0
    %524 = vmatpush1.msra.mxu0 0.0
    %525 = vmatprep.subr.mxu0 0.0
    %526 = vmatpush1.msra.mxu0 0.0
    %527 = vmatprep.subr.mxu0 0.0
    %528 = vmatpush1.msra.mxu0 0.0
    %529 = vmatprep.subr.mxu0 0.0
    %530 = vmatpush1.msra.mxu0 0.0
    %531 = vmatprep.subr.mxu0 0.0
    %532 = vmatpush1.msra.mxu0 0.0
    %533 = vmatprep.subr.mxu0 0.0
    %534 = vmatpush1.msra.mxu0 0.0
    %535 = vmatprep.subr.mxu0 0.0
    %536 = vmatpush1.msra.mxu0 0.0
    %537 = vmatprep.subr.mxu0 0.0
    %538 = vmatpush1.msra.mxu0 0.0
    %539 = vmatprep.subr.mxu0 0.0
    %540 = vmatpush1.msra.mxu0 0.0
    %541 = vmatprep.subr.mxu0 0.0
    %542 = vmatpush1.msra.mxu0 0.0
    %543 = vmatprep.subr.mxu0 0.0
    %544 = vmatpush1.msra.mxu0 0.0
    %545 = vmatprep.subr.mxu0 0.0
    %546 = vmatpush1.msra.mxu0 0.0
    %547 = vmatprep.subr.mxu0 0.0
    %548 = vmatpush1.msra.mxu0 0.0
    %549 = vmatprep.subr.mxu0 0.0
    %550 = vmatpush1.msra.mxu0 0.0
    %551 = vmatprep.subr.mxu0 0.0
    %552 = vmatpush1.msra.mxu0 0.0
    %553 = vmatprep.mubr.f32.mxu0 0.0
    %554 = vmatmul.mubr.f32.gmra.mrb[0].mxu0 %v485
    %v555 = vpop.f32.mrb[0].mxu0
    %v556 = vadd.f32 0.0, %v555
    %v557 = vpop.f32.mrb[0].mxu0
    %558 = vmatprep.mubr.f32.mxu0 0.0
    %559 = vmatmul.mubr.f32.gmra.mrb[0].mxu0 %v487
    %v560 = vpop.f32.mrb[0].mxu0
    %v561 = vadd.f32 0.0, %v560
    %v562 = vpop.f32.mrb[0].mxu0
    %563 = vdwg.mxu0
    %v564 = vmul.f32 %v556, 0.35355338
    %v565 = vmul.f32 %v561, 0.35355338
    %v566 = vadd.f32 %v564, %v277
    %v567 = vadd.f32 %v565, %v278
    %v568 = vsel %vm94, %v566, -inf
    %569 = vmax.xlane.f32.xlu0 %v568
    %v570 = vpop.xlane.xlu0 %569
    %v571 = vsel %vm94, %v567, -inf
    %572 = vmax.xlane.f32.xlu0 %v571
    %v573 = vpop.xlane.xlu0 %572
    %v574 = vsub.f32 %v566, %v570
    %v575 = vsub.f32 %v567, %v573
    %v576 = vmul.f32 %v574, 1.442695
    %v577 = vpow.pop %v576
    %v578 = vmul.f32 %v575, 1.442695
    %v579 = vpow.pop %v578
    %v580 = vsel %vm94, %v577, 0.0
    %581 = vadd.xlane.f32.xlu0 %v580
    %v582 = vpop.xlane.xlu0 %581
    %v583 = vsel %vm94, %v579, 0.0
    %584 = vadd.xlane.f32.xlu0 %v583
    %v585 = vpop.xlane.xlu0 %584
    %v586 = vrcp.pop %v582
    %v587 = vmul.f32 %v577, %v586
    %v588 = vrcp.pop %v585
    %v589 = vmul.f32 %v579, %v588
    %590 = vrot.lane.b32.xlu0 %v370, 64
    %v591 = vpop.permute.xlu0 %590
    %592 = vrot.lane.b32.xlu0 %v375, 64
    %v593 = vpop.permute.xlu0 %592
    %v597 = vsel %vm94, %v587, 0
    %v600 = vsel %vm94, %v589, 0
    %602 = vmatprep.subr.mxu0 0.0
    %603 = vmatpush1.msra.mxu0 %v591
    %604 = vmatprep.subr.mxu0 0.0
    %605 = vmatpush1.msra.mxu0 %v593
    %606 = vmatprep.subr.mxu0 0.0
    %607 = vmatpush1.msra.mxu0 0.0
    %608 = vmatprep.subr.mxu0 0.0
    %609 = vmatpush1.msra.mxu0 0.0
    %610 = vmatprep.subr.mxu0 0.0
    %611 = vmatpush1.msra.mxu0 0.0
    %612 = vmatprep.subr.mxu0 0.0
    %613 = vmatpush1.msra.mxu0 0.0
    %614 = vmatprep.subr.mxu0 0.0
    %615 = vmatpush1.msra.mxu0 0.0
    %616 = vmatprep.subr.mxu0 0.0
    %617 = vmatpush1.msra.mxu0 0.0
    %618 = vmatprep.subr.mxu0 0.0
    %619 = vmatpush1.msra.mxu0 0.0
    %620 = vmatprep.subr.mxu0 0.0
    %621 = vmatpush1.msra.mxu0 0.0
    %622 = vmatprep.subr.mxu0 0.0
    %623 = vmatpush1.msra.mxu0 0.0
    %624 = vmatprep.subr.mxu0 0.0
    %625 = vmatpush1.msra.mxu0 0.0
    %626 = vmatprep.subr.mxu0 0.0
    %627 = vmatpush1.msra.mxu0 0.0
    %628 = vmatprep.subr.mxu0 0.0
    %629 = vmatpush1.msra.mxu0 0.0
    %630 = vmatprep.subr.mxu0 0.0
    %631 = vmatpush1.msra.mxu0 0.0
    %632 = vmatprep.subr.mxu0 0.0
    %633 = vmatpush1.msra.mxu0 0.0
    %634 = vmatprep.subr.mxu0 0.0
    %635 = vmatpush1.msra.mxu0 0.0
    %636 = vmatprep.subr.mxu0 0.0
    %637 = vmatpush1.msra.mxu0 0.0
    %638 = vmatprep.subr.mxu0 0.0
    %639 = vmatpush1.msra.mxu0 0.0
    %640 = vmatprep.subr.mxu0 0.0
    %641 = vmatpush1.msra.mxu0 0.0
    %642 = vmatprep.subr.mxu0 0.0
    %643 = vmatpush1.msra.mxu0 0.0
    %644 = vmatprep.subr.mxu0 0.0
    %645 = vmatpush1.msra.mxu0 0.0
    %646 = vmatprep.subr.mxu0 0.0
    %647 = vmatpush1.msra.mxu0 0.0
    %648 = vmatprep.subr.mxu0 0.0
    %649 = vmatpush1.msra.mxu0 0.0
    %650 = vmatprep.subr.mxu0 0.0
    %651 = vmatpush1.msra.mxu0 0.0
    %652 = vmatprep.subr.mxu0 0.0
    %653 = vmatpush1.msra.mxu0 0.0
    %654 = vmatprep.subr.mxu0 0.0
    %655 = vmatpush1.msra.mxu0 0.0
    %656 = vmatprep.subr.mxu0 0.0
    %657 = vmatpush1.msra.mxu0 0.0
    %658 = vmatprep.subr.mxu0 0.0
    %659 = vmatpush1.msra.mxu0 0.0
    %660 = vmatprep.subr.mxu0 0.0
    %661 = vmatpush1.msra.mxu0 0.0
    %662 = vmatprep.subr.mxu0 0.0
    %663 = vmatpush1.msra.mxu0 0.0
    %664 = vmatprep.subr.mxu0 0.0
    %665 = vmatpush1.msra.mxu0 0.0
    %666 = vmatprep.mubr.f32.mxu0 0.0
    %667 = vmatmul.mubr.f32.gmra.mrb[0].mxu0 %v597
    %v668 = vpop.f32.mrb[0].mxu0
    %v669 = vadd.f32 0.0, %v668
    %v670 = vpop.f32.mrb[0].mxu0
    %671 = vmatprep.mubr.f32.mxu0 0.0
    %672 = vmatmul.mubr.f32.gmra.mrb[0].mxu0 %v600
    %v673 = vpop.f32.mrb[0].mxu0
    %v674 = vadd.f32 0.0, %v673
    %v675 = vpop.f32.mrb[0].mxu0
    %676 = vdwg.mxu0
    %677 = vrot.lane.b32.xlu0 %v370, 120
    %v678 = vpop.permute.xlu0 %677
    %679 = vrot.lane.b32.xlu0 %v375, 120
    %v680 = vpop.permute.xlu0 %679
    %v681 = vsel %vm91, %v678, 0
    %v683 = vsel %vm91, %v680, 0
    %685 = vmatprep.subr.mxu0 0.0
    %686 = vmatpush1.msra.mxu0 %v472
    %687 = vmatprep.subr.mxu0 0.0
    %688 = vmatpush1.msra.mxu0 0.0
    %689 = vmatprep.subr.mxu0 0.0
    %690 = vmatpush1.msra.mxu0 0.0
    %691 = vmatprep.subr.mxu0 0.0
    %692 = vmatpush1.msra.mxu0 0.0
    %693 = vmatprep.subr.mxu0 0.0
    %694 = vmatpush1.msra.mxu0 0.0
    %695 = vmatprep.subr.mxu0 0.0
    %696 = vmatpush1.msra.mxu0 0.0
    %697 = vmatprep.subr.mxu0 0.0
    %698 = vmatpush1.msra.mxu0 0.0
    %699 = vmatprep.subr.mxu0 0.0
    %700 = vmatpush1.msra.mxu0 0.0
    %701 = vmatprep.subr.mxu0 0.0
    %702 = vmatpush1.msra.mxu0 0.0
    %703 = vmatprep.subr.mxu0 0.0
    %704 = vmatpush1.msra.mxu0 0.0
    %705 = vmatprep.subr.mxu0 0.0
    %706 = vmatpush1.msra.mxu0 0.0
    %707 = vmatprep.subr.mxu0 0.0
    %708 = vmatpush1.msra.mxu0 0.0
    %709 = vmatprep.subr.mxu0 0.0
    %710 = vmatpush1.msra.mxu0 0.0
    %711 = vmatprep.subr.mxu0 0.0
    %712 = vmatpush1.msra.mxu0 0.0
    %713 = vmatprep.subr.mxu0 0.0
    %714 = vmatpush1.msra.mxu0 0.0
    %715 = vmatprep.subr.mxu0 0.0
    %716 = vmatpush1.msra.mxu0 0.0
    %717 = vmatprep.subr.mxu0 0.0
    %718 = vmatpush1.msra.mxu0 0.0
    %719 = vmatprep.subr.mxu0 0.0
    %720 = vmatpush1.msra.mxu0 0.0
    %721 = vmatprep.subr.mxu0 0.0
    %722 = vmatpush1.msra.mxu0 0.0
    %723 = vmatprep.subr.mxu0 0.0
    %724 = vmatpush1.msra.mxu0 0.0
    %725 = vmatprep.subr.mxu0 0.0
    %726 = vmatpush1.msra.mxu0 0.0
    %727 = vmatprep.subr.mxu0 0.0
    %728 = vmatpush1.msra.mxu0 0.0
    %729 = vmatprep.subr.mxu0 0.0
    %730 = vmatpush1.msra.mxu0 0.0
    %731 = vmatprep.subr.mxu0 0.0
    %732 = vmatpush1.msra.mxu0 0.0
    %733 = vmatprep.subr.mxu0 0.0
    %734 = vmatpush1.msra.mxu0 0.0
    %735 = vmatprep.subr.mxu0 0.0
    %736 = vmatpush1.msra.mxu0 0.0
    %737 = vmatprep.subr.mxu0 0.0
    %738 = vmatpush1.msra.mxu0 0.0
    %739 = vmatprep.subr.mxu0 0.0
    %740 = vmatpush1.msra.mxu0 0.0
    %741 = vmatprep.subr.mxu0 0.0
    %742 = vmatpush1.msra.mxu0 0.0
    %743 = vmatprep.subr.mxu0 0.0
    %744 = vmatpush1.msra.mxu0 0.0
    %745 = vmatprep.subr.mxu0 0.0
    %746 = vmatpush1.msra.mxu0 0.0
    %747 = vmatprep.subr.mxu0 0.0
    %748 = vmatpush1.msra.mxu0 0.0
    %749 = vmatprep.mubr.f32.mxu0 0.0
    %750 = vmatmul.mubr.f32.gmra.mrb[0].mxu0 %v681
    %v751 = vpop.f32.mrb[0].mxu0
    %v752 = vadd.f32 0.0, %v751
    %v753 = vpop.f32.mrb[0].mxu0
    %754 = vmatprep.mubr.f32.mxu0 0.0
    %755 = vmatmul.mubr.f32.gmra.mrb[0].mxu0 %v683
    %v756 = vpop.f32.mrb[0].mxu0
    %v757 = vadd.f32 0.0, %v756
    %v758 = vpop.f32.mrb[0].mxu0
    %759 = vdwg.mxu0
    %v760 = vmul.f32 %v752, 0.35355338
    %v761 = vmul.f32 %v757, 0.35355338
    %v762 = vadd.f32 %v760, %v277
    %v763 = vadd.f32 %v761, %v278
    %v764 = vsel %vm94, %v762, -inf
    %765 = vmax.xlane.f32.xlu0 %v764
    %v766 = vpop.xlane.xlu0 %765
    %v767 = vsel %vm94, %v763, -inf
    %768 = vmax.xlane.f32.xlu0 %v767
    %v769 = vpop.xlane.xlu0 %768
    %v770 = vsub.f32 %v762, %v766
    %v771 = vsub.f32 %v763, %v769
    %v772 = vmul.f32 %v770, 1.442695
    %v773 = vpow.pop %v772
    %v774 = vmul.f32 %v771, 1.442695
    %v775 = vpow.pop %v774
    %v776 = vsel %vm94, %v773, 0.0
    %777 = vadd.xlane.f32.xlu0 %v776
    %v778 = vpop.xlane.xlu0 %777
    %v779 = vsel %vm94, %v775, 0.0
    %780 = vadd.xlane.f32.xlu0 %v779
    %v781 = vpop.xlane.xlu0 %780
    %v782 = vrcp.pop %v778
    %v783 = vmul.f32 %v773, %v782
    %v784 = vrcp.pop %v781
    %v785 = vmul.f32 %v775, %v784
    %786 = vrot.lane.b32.xlu0 %v370, 56
    %v787 = vpop.permute.xlu0 %786
    %788 = vrot.lane.b32.xlu0 %v375, 56
    %v789 = vpop.permute.xlu0 %788
    %v793 = vsel %vm94, %v783, 0
    %v796 = vsel %vm94, %v785, 0
    %798 = vmatprep.subr.mxu0 0.0
    %799 = vmatpush1.msra.mxu0 %v787
    %800 = vmatprep.subr.mxu0 0.0
    %801 = vmatpush1.msra.mxu0 %v789
    %802 = vmatprep.subr.mxu0 0.0
    %803 = vmatpush1.msra.mxu0 0.0
    %804 = vmatprep.subr.mxu0 0.0
    %805 = vmatpush1.msra.mxu0 0.0
    %806 = vmatprep.subr.mxu0 0.0
    %807 = vmatpush1.msra.mxu0 0.0
    %808 = vmatprep.subr.mxu0 0.0
    %809 = vmatpush1.msra.mxu0 0.0
    %810 = vmatprep.subr.mxu0 0.0
    %811 = vmatpush1.msra.mxu0 0.0
    %812 = vmatprep.subr.mxu0 0.0
    %813 = vmatpush1.msra.mxu0 0.0
    %814 = vmatprep.subr.mxu0 0.0
    %815 = vmatpush1.msra.mxu0 0.0
    %816 = vmatprep.subr.mxu0 0.0
    %817 = vmatpush1.msra.mxu0 0.0
    %818 = vmatprep.subr.mxu0 0.0
    %819 = vmatpush1.msra.mxu0 0.0
    %820 = vmatprep.subr.mxu0 0.0
    %821 = vmatpush1.msra.mxu0 0.0
    %822 = vmatprep.subr.mxu0 0.0
    %823 = vmatpush1.msra.mxu0 0.0
    %824 = vmatprep.subr.mxu0 0.0
    %825 = vmatpush1.msra.mxu0 0.0
    %826 = vmatprep.subr.mxu0 0.0
    %827 = vmatpush1.msra.mxu0 0.0
    %828 = vmatprep.subr.mxu0 0.0
    %829 = vmatpush1.msra.mxu0 0.0
    %830 = vmatprep.subr.mxu0 0.0
    %831 = vmatpush1.msra.mxu0 0.0
    %832 = vmatprep.subr.mxu0 0.0
    %833 = vmatpush1.msra.mxu0 0.0
    %834 = vmatprep.subr.mxu0 0.0
    %835 = vmatpush1.msra.mxu0 0.0
    %836 = vmatprep.subr.mxu0 0.0
    %837 = vmatpush1.msra.mxu0 0.0
    %838 = vmatprep.subr.mxu0 0.0
    %839 = vmatpush1.msra.mxu0 0.0
    %840 = vmatprep.subr.mxu0 0.0
    %841 = vmatpush1.msra.mxu0 0.0
    %842 = vmatprep.subr.mxu0 0.0
    %843 = vmatpush1.msra.mxu0 0.0
    %844 = vmatprep.subr.mxu0 0.0
    %845 = vmatpush1.msra.mxu0 0.0
    %846 = vmatprep.subr.mxu0 0.0
    %847 = vmatpush1.msra.mxu0 0.0
    %848 = vmatprep.subr.mxu0 0.0
    %849 = vmatpush1.msra.mxu0 0.0
    %850 = vmatprep.subr.mxu0 0.0
    %851 = vmatpush1.msra.mxu0 0.0
    %852 = vmatprep.subr.mxu0 0.0
    %853 = vmatpush1.msra.mxu0 0.0
    %854 = vmatprep.subr.mxu0 0.0
    %855 = vmatpush1.msra.mxu0 0.0
    %856 = vmatprep.subr.mxu0 0.0
    %857 = vmatpush1.msra.mxu0 0.0
    %858 = vmatprep.subr.mxu0 0.0
    %859 = vmatpush1.msra.mxu0 0.0
    %860 = vmatprep.subr.mxu0 0.0
    %861 = vmatpush1.msra.mxu0 0.0
    %862 = vmatprep.mubr.f32.mxu0 0.0
    %863 = vmatmul.mubr.f32.gmra.mrb[0].mxu0 %v793
    %v864 = vpop.f32.mrb[0].mxu0
    %v865 = vadd.f32 0.0, %v864
    %v866 = vpop.f32.mrb[0].mxu0
    %867 = vmatprep.mubr.f32.mxu0 0.0
    %868 = vmatmul.mubr.f32.gmra.mrb[0].mxu0 %v796
    %v869 = vpop.f32.mrb[0].mxu0
    %v870 = vadd.f32 0.0, %v869
    %v871 = vpop.f32.mrb[0].mxu0
    %872 = vdwg.mxu0
    %873 = vrot.lane.b32.xlu0 %v370, 112
    %v874 = vpop.permute.xlu0 %873
    %875 = vrot.lane.b32.xlu0 %v375, 112
    %v876 = vpop.permute.xlu0 %875
    %v877 = vsel %vm91, %v874, 0
    %v879 = vsel %vm91, %v876, 0
    %881 = vmatprep.subr.mxu0 0.0
    %882 = vmatpush1.msra.mxu0 %v477
    %883 = vmatprep.subr.mxu0 0.0
    %884 = vmatpush1.msra.mxu0 0.0
    %885 = vmatprep.subr.mxu0 0.0
    %886 = vmatpush1.msra.mxu0 0.0
    %887 = vmatprep.subr.mxu0 0.0
    %888 = vmatpush1.msra.mxu0 0.0
    %889 = vmatprep.subr.mxu0 0.0
    %890 = vmatpush1.msra.mxu0 0.0
    %891 = vmatprep.subr.mxu0 0.0
    %892 = vmatpush1.msra.mxu0 0.0
    %893 = vmatprep.subr.mxu0 0.0
    %894 = vmatpush1.msra.mxu0 0.0
    %895 = vmatprep.subr.mxu0 0.0
    %896 = vmatpush1.msra.mxu0 0.0
    %897 = vmatprep.subr.mxu0 0.0
    %898 = vmatpush1.msra.mxu0 0.0
    %899 = vmatprep.subr.mxu0 0.0
    %900 = vmatpush1.msra.mxu0 0.0
    %901 = vmatprep.subr.mxu0 0.0
    %902 = vmatpush1.msra.mxu0 0.0
    %903 = vmatprep.subr.mxu0 0.0
    %904 = vmatpush1.msra.mxu0 0.0
    %905 = vmatprep.subr.mxu0 0.0
    %906 = vmatpush1.msra.mxu0 0.0
    %907 = vmatprep.subr.mxu0 0.0
    %908 = vmatpush1.msra.mxu0 0.0
    %909 = vmatprep.subr.mxu0 0.0
    %910 = vmatpush1.msra.mxu0 0.0
    %911 = vmatprep.subr.mxu0 0.0
    %912 = vmatpush1.msra.mxu0 0.0
    %913 = vmatprep.subr.mxu0 0.0
    %914 = vmatpush1.msra.mxu0 0.0
    %915 = vmatprep.subr.mxu0 0.0
    %916 = vmatpush1.msra.mxu0 0.0
    %917 = vmatprep.subr.mxu0 0.0
    %918 = vmatpush1.msra.mxu0 0.0
    %919 = vmatprep.subr.mxu0 0.0
    %920 = vmatpush1.msra.mxu0 0.0
    %921 = vmatprep.subr.mxu0 0.0
    %922 = vmatpush1.msra.mxu0 0.0
    %923 = vmatprep.subr.mxu0 0.0
    %924 = vmatpush1.msra.mxu0 0.0
    %925 = vmatprep.subr.mxu0 0.0
    %926 = vmatpush1.msra.mxu0 0.0
    %927 = vmatprep.subr.mxu0 0.0
    %928 = vmatpush1.msra.mxu0 0.0
    %929 = vmatprep.subr.mxu0 0.0
    %930 = vmatpush1.msra.mxu0 0.0
    %931 = vmatprep.subr.mxu0 0.0
    %932 = vmatpush1.msra.mxu0 0.0
    %933 = vmatprep.subr.mxu0 0.0
    %934 = vmatpush1.msra.mxu0 0.0
    %935 = vmatprep.subr.mxu0 0.0
    %936 = vmatpush1.msra.mxu0 0.0
    %937 = vmatprep.subr.mxu0 0.0
    %938 = vmatpush1.msra.mxu0 0.0
    %939 = vmatprep.subr.mxu0 0.0
    %940 = vmatpush1.msra.mxu0 0.0
    %941 = vmatprep.subr.mxu0 0.0
    %942 = vmatpush1.msra.mxu0 0.0
    %943 = vmatprep.subr.mxu0 0.0
    %944 = vmatpush1.msra.mxu0 0.0
    %945 = vmatprep.mubr.f32.mxu0 0.0
    %946 = vmatmul.mubr.f32.gmra.mrb[0].mxu0 %v877
    %v947 = vpop.f32.mrb[0].mxu0
    %v948 = vadd.f32 0.0, %v947
    %v949 = vpop.f32.mrb[0].mxu0
    %950 = vmatprep.mubr.f32.mxu0 0.0
    %951 = vmatmul.mubr.f32.gmra.mrb[0].mxu0 %v879
    %v952 = vpop.f32.mrb[0].mxu0
    %v953 = vadd.f32 0.0, %v952
    %v954 = vpop.f32.mrb[0].mxu0
    %955 = vdwg.mxu0
    %v956 = vmul.f32 %v948, 0.35355338
    %v957 = vmul.f32 %v953, 0.35355338
    %v958 = vadd.f32 %v956, %v277
    %v959 = vadd.f32 %v957, %v278
    %v960 = vsel %vm94, %v958, -inf
    %961 = vmax.xlane.f32.xlu0 %v960
    %v962 = vpop.xlane.xlu0 %961
    %v963 = vsel %vm94, %v959, -inf
    %964 = vmax.xlane.f32.xlu0 %v963
    %v965 = vpop.xlane.xlu0 %964
    %v966 = vsub.f32 %v958, %v962
    %v967 = vsub.f32 %v959, %v965
    %v968 = vmul.f32 %v966, 1.442695
    %v969 = vpow.pop %v968
    %v970 = vmul.f32 %v967, 1.442695
    %v971 = vpow.pop %v970
    %v972 = vsel %vm94, %v969, 0.0
    %973 = vadd.xlane.f32.xlu0 %v972
    %v974 = vpop.xlane.xlu0 %973
    %v975 = vsel %vm94, %v971, 0.0
    %976 = vadd.xlane.f32.xlu0 %v975
    %v977 = vpop.xlane.xlu0 %976
    %v978 = vrcp.pop %v974
    %v979 = vmul.f32 %v969, %v978
    %v980 = vrcp.pop %v977
    %v981 = vmul.f32 %v971, %v980
    %982 = vrot.lane.b32.xlu0 %v370, 48
    %v983 = vpop.permute.xlu0 %982
    %984 = vrot.lane.b32.xlu0 %v375, 48
    %v985 = vpop.permute.xlu0 %984
    %v989 = vsel %vm94, %v979, 0
    %v992 = vsel %vm94, %v981, 0
    %994 = vmatprep.subr.mxu0 0.0
    %995 = vmatpush1.msra.mxu0 %v983
    %996 = vmatprep.subr.mxu0 0.0
    %997 = vmatpush1.msra.mxu0 %v985
    %998 = vmatprep.subr.mxu0 0.0
    %999 = vmatpush1.msra.mxu0 0.0
    %1000 = vmatprep.subr.mxu0 0.0
    %1001 = vmatpush1.msra.mxu0 0.0
    %1002 = vmatprep.subr.mxu0 0.0
    %1003 = vmatpush1.msra.mxu0 0.0
    %1004 = vmatprep.subr.mxu0 0.0
    %1005 = vmatpush1.msra.mxu0 0.0
    %1006 = vmatprep.subr.mxu0 0.0
    %1007 = vmatpush1.msra.mxu0 0.0
    %1008 = vmatprep.subr.mxu0 0.0
    %1009 = vmatpush1.msra.mxu0 0.0
    %1010 = vmatprep.subr.mxu0 0.0
    %1011 = vmatpush1.msra.mxu0 0.0
    %1012 = vmatprep.subr.mxu0 0.0
    %1013 = vmatpush1.msra.mxu0 0.0
    %1014 = vmatprep.subr.mxu0 0.0
    %1015 = vmatpush1.msra.mxu0 0.0
    %1016 = vmatprep.subr.mxu0 0.0
    %1017 = vmatpush1.msra.mxu0 0.0
    %1018 = vmatprep.subr.mxu0 0.0
    %1019 = vmatpush1.msra.mxu0 0.0
    %1020 = vmatprep.subr.mxu0 0.0
    %1021 = vmatpush1.msra.mxu0 0.0
    %1022 = vmatprep.subr.mxu0 0.0
    %1023 = vmatpush1.msra.mxu0 0.0
    %1024 = vmatprep.subr.mxu0 0.0
    %1025 = vmatpush1.msra.mxu0 0.0
    %1026 = vmatprep.subr.mxu0 0.0
    %1027 = vmatpush1.msra.mxu0 0.0
    %1028 = vmatprep.subr.mxu0 0.0
    %1029 = vmatpush1.msra.mxu0 0.0
    %1030 = vmatprep.subr.mxu0 0.0
    %1031 = vmatpush1.msra.mxu0 0.0
    %1032 = vmatprep.subr.mxu0 0.0
    %1033 = vmatpush1.msra.mxu0 0.0
    %1034 = vmatprep.subr.mxu0 0.0
    %1035 = vmatpush1.msra.mxu0 0.0
    %1036 = vmatprep.subr.mxu0 0.0
    %1037 = vmatpush1.msra.mxu0 0.0
    %1038 = vmatprep.subr.mxu0 0.0
    %1039 = vmatpush1.msra.mxu0 0.0
    %1040 = vmatprep.subr.mxu0 0.0
    %1041 = vmatpush1.msra.mxu0 0.0
    %1042 = vmatprep.subr.mxu0 0.0
    %1043 = vmatpush1.msra.mxu0 0.0
    %1044 = vmatprep.subr.mxu0 0.0
    %1045 = vmatpush1.msra.mxu0 0.0
    %1046 = vmatprep.subr.mxu0 0.0
    %1047 = vmatpush1.msra.mxu0 0.0
    %1048 = vmatprep.subr.mxu0 0.0
    %1049 = vmatpush1.msra.mxu0 0.0
    %1050 = vmatprep.subr.mxu0 0.0
    %1051 = vmatpush1.msra.mxu0 0.0
    %1052 = vmatprep.subr.mxu0 0.0
    %1053 = vmatpush1.msra.mxu0 0.0
    %1054 = vmatprep.subr.mxu0 0.0
    %1055 = vmatpush1.msra.mxu0 0.0
    %1056 = vmatprep.subr.mxu0 0.0
    %1057 = vmatpush1.msra.mxu0 0.0
    %1058 = vmatprep.mubr.f32.mxu0 0.0
    %1059 = vmatmul.mubr.f32.gmra.mrb[0].mxu0 %v989
    %v1060 = vpop.f32.mrb[0].mxu0
    %v1061 = vadd.f32 0.0, %v1060
    %v1062 = vpop.f32.mrb[0].mxu0
    %1063 = vmatprep.mubr.f32.mxu0 0.0
    %1064 = vmatmul.mubr.f32.gmra.mrb[0].mxu0 %v992
    %v1065 = vpop.f32.mrb[0].mxu0
    %v1066 = vadd.f32 0.0, %v1065
    %v1067 = vpop.f32.mrb[0].mxu0
    %1068 = vdwg.mxu0
    %1069 = vrot.lane.b32.xlu0 %v370, 104
    %v1070 = vpop.permute.xlu0 %1069
    %1071 = vrot.lane.b32.xlu0 %v375, 104
    %v1072 = vpop.permute.xlu0 %1071
    %v1073 = vsel %vm91, %v1070, 0
    %v1075 = vsel %vm91, %v1072, 0
    %1077 = vmatprep.subr.mxu0 0.0
    %1078 = vmatpush1.msra.mxu0 %v482
    %1079 = vmatprep.subr.mxu0 0.0
    %1080 = vmatpush1.msra.mxu0 0.0
    %1081 = vmatprep.subr.mxu0 0.0
    %1082 = vmatpush1.msra.mxu0 0.0
    %1083 = vmatprep.subr.mxu0 0.0
    %1084 = vmatpush1.msra.mxu0 0.0
    %1085 = vmatprep.subr.mxu0 0.0
    %1086 = vmatpush1.msra.mxu0 0.0
    %1087 = vmatprep.subr.mxu0 0.0
    %1088 = vmatpush1.msra.mxu0 0.0
    %1089 = vmatprep.subr.mxu0 0.0
    %1090 = vmatpush1.msra.mxu0 0.0
    %1091 = vmatprep.subr.mxu0 0.0
    %1092 = vmatpush1.msra.mxu0 0.0
    %1093 = vmatprep.subr.mxu0 0.0
    %1094 = vmatpush1.msra.mxu0 0.0
    %1095 = vmatprep.subr.mxu0 0.0
    %1096 = vmatpush1.msra.mxu0 0.0
    %1097 = vmatprep.subr.mxu0 0.0
    %1098 = vmatpush1.msra.mxu0 0.0
    %1099 = vmatprep.subr.mxu0 0.0
    %1100 = vmatpush1.msra.mxu0 0.0
    %1101 = vmatprep.subr.mxu0 0.0
    %1102 = vmatpush1.msra.mxu0 0.0
    %1103 = vmatprep.subr.mxu0 0.0
    %1104 = vmatpush1.msra.mxu0 0.0
    %1105 = vmatprep.subr.mxu0 0.0
    %1106 = vmatpush1.msra.mxu0 0.0
    %1107 = vmatprep.subr.mxu0 0.0
    %1108 = vmatpush1.msra.mxu0 0.0
    %1109 = vmatprep.subr.mxu0 0.0
    %1110 = vmatpush1.msra.mxu0 0.0
    %1111 = vmatprep.subr.mxu0 0.0
    %1112 = vmatpush1.msra.mxu0 0.0
    %1113 = vmatprep.subr.mxu0 0.0
    %1114 = vmatpush1.msra.mxu0 0.0
    %1115 = vmatprep.subr.mxu0 0.0
    %1116 = vmatpush1.msra.mxu0 0.0
    %1117 = vmatprep.subr.mxu0 0.0
    %1118 = vmatpush1.msra.mxu0 0.0
    %1119 = vmatprep.subr.mxu0 0.0
    %1120 = vmatpush1.msra.mxu0 0.0
    %1121 = vmatprep.subr.mxu0 0.0
    %1122 = vmatpush1.msra.mxu0 0.0
    %1123 = vmatprep.subr.mxu0 0.0
    %1124 = vmatpush1.msra.mxu0 0.0
    %1125 = vmatprep.subr.mxu0 0.0
    %1126 = vmatpush1.msra.mxu0 0.0
    %1127 = vmatprep.subr.mxu0 0.0
    %1128 = vmatpush1.msra.mxu0 0.0
    %1129 = vmatprep.subr.mxu0 0.0
    %1130 = vmatpush1.msra.mxu0 0.0
    %1131 = vmatprep.subr.mxu0 0.0
    %1132 = vmatpush1.msra.mxu0 0.0
    %1133 = vmatprep.subr.mxu0 0.0
    %1134 = vmatpush1.msra.mxu0 0.0
    %1135 = vmatprep.subr.mxu0 0.0
    %1136 = vmatpush1.msra.mxu0 0.0
    %1137 = vmatprep.subr.mxu0 0.0
    %1138 = vmatpush1.msra.mxu0 0.0
    %1139 = vmatprep.subr.mxu0 0.0
    %1140 = vmatpush1.msra.mxu0 0.0
    %1141 = vmatprep.mubr.f32.mxu0 0.0
    %1142 = vmatmul.mubr.f32.gmra.mrb[0].mxu0 %v1073
    %v1143 = vpop.f32.mrb[0].mxu0
    %v1144 = vadd.f32 0.0, %v1143
    %v1145 = vpop.f32.mrb[0].mxu0
    %1146 = vmatprep.mubr.f32.mxu0 0.0
    %1147 = vmatmul.mubr.f32.gmra.mrb[0].mxu0 %v1075
    %v1148 = vpop.f32.mrb[0].mxu0
    %v1149 = vadd.f32 0.0, %v1148
    %v1150 = vpop.f32.mrb[0].mxu0
    %1151 = vdwg.mxu0
    %v1152 = vmul.f32 %v1144, 0.35355338
    %v1153 = vmul.f32 %v1149, 0.35355338
    %v1154 = vadd.f32 %v1152, %v277
    %v1155 = vadd.f32 %v1153, %v278
    %v1156 = vsel %vm94, %v1154, -inf
    %1157 = vmax.xlane.f32.xlu0 %v1156
    %v1158 = vpop.xlane.xlu0 %1157
    %v1159 = vsel %vm94, %v1155, -inf
    %1160 = vmax.xlane.f32.xlu0 %v1159
    %v1161 = vpop.xlane.xlu0 %1160
    %v1162 = vsub.f32 %v1154, %v1158
    %v1163 = vsub.f32 %v1155, %v1161
    %v1164 = vmul.f32 %v1162, 1.442695
    %v1165 = vpow.pop %v1164
    %v1166 = vmul.f32 %v1163, 1.442695
    %v1167 = vpow.pop %v1166
    %v1168 = vsel %vm94, %v1165, 0.0
    %1169 = vadd.xlane.f32.xlu0 %v1168
    %v1170 = vpop.xlane.xlu0 %1169
    %v1171 = vsel %vm94, %v1167, 0.0
    %1172 = vadd.xlane.f32.xlu0 %v1171
    %v1173 = vpop.xlane.xlu0 %1172
    %v1174 = vrcp.pop %v1170
    %v1175 = vmul.f32 %v1165, %v1174
    %v1176 = vrcp.pop %v1173
    %v1177 = vmul.f32 %v1167, %v1176
    %1178 = vrot.lane.b32.xlu0 %v370, 40
    %v1179 = vpop.permute.xlu0 %1178
    %1180 = vrot.lane.b32.xlu0 %v375, 40
    %v1181 = vpop.permute.xlu0 %1180
    %v1185 = vsel %vm94, %v1175, 0
    %v1188 = vsel %vm94, %v1177, 0
    %1190 = vmatprep.subr.mxu0 0.0
    %1191 = vmatpush1.msra.mxu0 %v1179
    %1192 = vmatprep.subr.mxu0 0.0
    %1193 = vmatpush1.msra.mxu0 %v1181
    %1194 = vmatprep.subr.mxu0 0.0
    %1195 = vmatpush1.msra.mxu0 0.0
    %1196 = vmatprep.subr.mxu0 0.0
    %1197 = vmatpush1.msra.mxu0 0.0
    %1198 = vmatprep.subr.mxu0 0.0
    %1199 = vmatpush1.msra.mxu0 0.0
    %1200 = vmatprep.subr.mxu0 0.0
    %1201 = vmatpush1.msra.mxu0 0.0
    %1202 = vmatprep.subr.mxu0 0.0
    %1203 = vmatpush1.msra.mxu0 0.0
    %1204 = vmatprep.subr.mxu0 0.0
    %1205 = vmatpush1.msra.mxu0 0.0
    %1206 = vmatprep.subr.mxu0 0.0
    %1207 = vmatpush1.msra.mxu0 0.0
    %1208 = vmatprep.subr.mxu0 0.0
    %1209 = vmatpush1.msra.mxu0 0.0
    %1210 = vmatprep.subr.mxu0 0.0
    %1211 = vmatpush1.msra.mxu0 0.0
    %1212 = vmatprep.subr.mxu0 0.0
    %1213 = vmatpush1.msra.mxu0 0.0
    %1214 = vmatprep.subr.mxu0 0.0
    %1215 = vmatpush1.msra.mxu0 0.0
    %1216 = vmatprep.subr.mxu0 0.0
    %1217 = vmatpush1.msra.mxu0 0.0
    %1218 = vmatprep.subr.mxu0 0.0
    %1219 = vmatpush1.msra.mxu0 0.0
    %1220 = vmatprep.subr.mxu0 0.0
    %1221 = vmatpush1.msra.mxu0 0.0
    %1222 = vmatprep.subr.mxu0 0.0
    %1223 = vmatpush1.msra.mxu0 0.0
    %1224 = vmatprep.subr.mxu0 0.0
    %1225 = vmatpush1.msra.mxu0 0.0
    %1226 = vmatprep.subr.mxu0 0.0
    %1227 = vmatpush1.msra.mxu0 0.0
    %1228 = vmatprep.subr.mxu0 0.0
    %1229 = vmatpush1.msra.mxu0 0.0
    %1230 = vmatprep.subr.mxu0 0.0
    %1231 = vmatpush1.msra.mxu0 0.0
    %1232 = vmatprep.subr.mxu0 0.0
    %1233 = vmatpush1.msra.mxu0 0.0
    %1234 = vmatprep.subr.mxu0 0.0
    %1235 = vmatpush1.msra.mxu0 0.0
    %1236 = vmatprep.subr.mxu0 0.0
    %1237 = vmatpush1.msra.mxu0 0.0
    %1238 = vmatprep.subr.mxu0 0.0
    %1239 = vmatpush1.msra.mxu0 0.0
    %1240 = vmatprep.subr.mxu0 0.0
    %1241 = vmatpush1.msra.mxu0 0.0
    %1242 = vmatprep.subr.mxu0 0.0
    %1243 = vmatpush1.msra.mxu0 0.0
    %1244 = vmatprep.subr.mxu0 0.0
    %1245 = vmatpush1.msra.mxu0 0.0
    %1246 = vmatprep.subr.mxu0 0.0
    %1247 = vmatpush1.msra.mxu0 0.0
    %1248 = vmatprep.subr.mxu0 0.0
    %1249 = vmatpush1.msra.mxu0 0.0
    %1250 = vmatprep.subr.mxu0 0.0
    %1251 = vmatpush1.msra.mxu0 0.0
    %1252 = vmatprep.subr.mxu0 0.0
    %1253 = vmatpush1.msra.mxu0 0.0
    %1254 = vmatprep.mubr.f32.mxu0 0.0
    %1255 = vmatmul.mubr.f32.gmra.mrb[0].mxu0 %v1185
    %v1256 = vpop.f32.mrb[0].mxu0
    %v1257 = vadd.f32 0.0, %v1256
    %v1258 = vpop.f32.mrb[0].mxu0
    %1259 = vmatprep.mubr.f32.mxu0 0.0
    %1260 = vmatmul.mubr.f32.gmra.mrb[0].mxu0 %v1188
    %v1261 = vpop.f32.mrb[0].mxu0
    %v1262 = vadd.f32 0.0, %v1261
    %v1263 = vpop.f32.mrb[0].mxu0
    %1264 = vdwg.mxu0
    %1267 = vrot.lane.b32.xlu0 %v865, 8
    %v1268 = vpop.permute.xlu0 %1267
    %1269 = vrot.lane.b32.xlu0 %v870, 8
    %v1270 = vpop.permute.xlu0 %1269
    %1275 = vrot.lane.b32.xlu0 %v1061, 16
    %v1276 = vpop.permute.xlu0 %1275
    %1277 = vrot.lane.b32.xlu0 %v1066, 16
    %v1278 = vpop.permute.xlu0 %1277
    %1283 = vrot.lane.b32.xlu0 %v1257, 24
    %v1284 = vpop.permute.xlu0 %1283
    %1285 = vrot.lane.b32.xlu0 %v1262, 24
    %v1286 = vpop.permute.xlu0 %1285
    %v1289 = vsel %vm91, %v669, %v1268
    %v1290 = vsel %vm91, %v674, %v1270
    %v1291 = vsel %vm94, %v1289, %v1276
    %v1292 = vsel %vm94, %v1290, %v1278
    %v1293 = vsel %vm97, %v1291, %v1284
    %v1294 = vsel %vm97, %v1292, %v1286
    %v1295 = vlaneseq
    %v1296 = vshrl.u32 %v1295, 7
    %v1297 = vsub.s32 0, %v1296
    %v1298 = vrot.slane %v292, %v1297
    %v1300 = vsel %vm100, %v1293, 0
    %v1303 = vsel %vm100, %v1294, 0
    %1305 = vmatprep.subr.mxu0 0.0
    %1306 = vmatpush1.msra.mxu0 %v288
    %1307 = vmatprep.subr.mxu0 0.0
    %1308 = vmatpush1.msra.mxu0 %v289
    %1309 = vmatprep.subr.mxu0 0.0
    %1310 = vmatpush1.msra.mxu0 %v290
    %1311 = vmatprep.subr.mxu0 0.0
    %1312 = vmatpush1.msra.mxu0 %v291
    %1313 = vmatprep.subr.mxu0 0.0
    %1314 = vmatpush1.msra.mxu0 0.0
    %1315 = vmatprep.subr.mxu0 0.0
    %1316 = vmatpush1.msra.mxu0 0.0
    %1317 = vmatprep.subr.mxu0 0.0
    %1318 = vmatpush1.msra.mxu0 0.0
    %1319 = vmatprep.subr.mxu0 0.0
    %1320 = vmatpush1.msra.mxu0 0.0
    %1321 = vmatprep.subr.mxu0 0.0
    %1322 = vmatpush1.msra.mxu0 0.0
    %1323 = vmatprep.subr.mxu0 0.0
    %1324 = vmatpush1.msra.mxu0 0.0
    %1325 = vmatprep.subr.mxu0 0.0
    %1326 = vmatpush1.msra.mxu0 0.0
    %1327 = vmatprep.subr.mxu0 0.0
    %1328 = vmatpush1.msra.mxu0 0.0
    %1329 = vmatprep.subr.mxu0 0.0
    %1330 = vmatpush1.msra.mxu0 0.0
    %1331 = vmatprep.subr.mxu0 0.0
    %1332 = vmatpush1.msra.mxu0 0.0
    %1333 = vmatprep.subr.mxu0 0.0
    %1334 = vmatpush1.msra.mxu0 0.0
    %1335 = vmatprep.subr.mxu0 0.0
    %1336 = vmatpush1.msra.mxu0 0.0
    %1337 = vmatprep.subr.mxu0 0.0
    %1338 = vmatpush1.msra.mxu0 0.0
    %1339 = vmatprep.subr.mxu0 0.0
    %1340 = vmatpush1.msra.mxu0 0.0
    %1341 = vmatprep.subr.mxu0 0.0
    %1342 = vmatpush1.msra.mxu0 0.0
    %1343 = vmatprep.subr.mxu0 0.0
    %1344 = vmatpush1.msra.mxu0 0.0
    %1345 = vmatprep.subr.mxu0 0.0
    %1346 = vmatpush1.msra.mxu0 0.0
    %1347 = vmatprep.subr.mxu0 0.0
    %1348 = vmatpush1.msra.mxu0 0.0
    %1349 = vmatprep.subr.mxu0 0.0
    %1350 = vmatpush1.msra.mxu0 0.0
    %1351 = vmatprep.subr.mxu0 0.0
    %1352 = vmatpush1.msra.mxu0 0.0
    %1353 = vmatprep.subr.mxu0 0.0
    %1354 = vmatpush1.msra.mxu0 0.0
    %1355 = vmatprep.subr.mxu0 0.0
    %1356 = vmatpush1.msra.mxu0 0.0
    %1357 = vmatprep.subr.mxu0 0.0
    %1358 = vmatpush1.msra.mxu0 0.0
    %1359 = vmatprep.subr.mxu0 0.0
    %1360 = vmatpush1.msra.mxu0 0.0
    %1361 = vmatprep.subr.mxu0 0.0
    %1362 = vmatpush1.msra.mxu0 0.0
    %1363 = vmatprep.subr.mxu0 0.0
    %1364 = vmatpush1.msra.mxu0 0.0
    %1365 = vmatprep.subr.mxu0 0.0
    %1366 = vmatpush1.msra.mxu0 0.0
    %1367 = vmatprep.subr.mxu0 0.0
    %1368 = vmatpush1.msra.mxu0 0.0
    %1369 = vmatprep.mubr.f32.mxu0 0.0
    %1370 = vmatmul.mubr.f32.gmra.mrb[0].mxu0 %v1300
    %v1371 = vpop.f32.mrb[0].mxu0
    %v1372 = vadd.f32 %v1298, %v1371
    %v1373 = vpop.f32.mrb[0].mxu0
    %1374 = vmatprep.mubr.f32.mxu0 0.0
    %1375 = vmatmul.mubr.f32.gmra.mrb[0].mxu0 %v1303
    %v1376 = vpop.f32.mrb[0].mxu0
    %v1377 = vadd.f32 %v1298, %v1376
    %v1378 = vpop.f32.mrb[0].mxu0
    %1379 = vdwg.mxu0
    %v1380 = vld [vmem:[#allocation5 + $0xb8] sm:$0xff]
    %v1381 = vld [vmem:[#allocation5 + $0xc0] sm:$0xff]
    %v1382 = vld [vmem:[#allocation5 + $0xc8] sm:$0xff]
    %v1383 = vld [vmem:[#allocation5 + $0xd0] sm:$0xff]
    %v1384 = vld [vmem:[#allocation5 + $0xd8] sm:$0x1]
    %v1385 = vlaneseq
    %v1386 = vshrl.u32 %v1385, 7
    %v1387 = vsub.s32 0, %v1386
    %v1388 = vrot.slane %v1384, %v1387
    %v1390 = vsel %vm100, %v1372, 0
    %v1393 = vsel %vm100, %v1377, 0
    %1395 = vmatprep.subr.mxu0 0.0
    %1396 = vmatpush1.msra.mxu0 %v1380
    %1397 = vmatprep.subr.mxu0 0.0
    %1398 = vmatpush1.msra.mxu0 %v1381
    %1399 = vmatprep.subr.mxu0 0.0
    %1400 = vmatpush1.msra.mxu0 %v1382
    %1401 = vmatprep.subr.mxu0 0.0
    %1402 = vmatpush1.msra.mxu0 %v1383
    %1403 = vmatprep.subr.mxu0 0.0
    %1404 = vmatpush1.msra.mxu0 0.0
    %1405 = vmatprep.subr.mxu0 0.0
    %1406 = vmatpush1.msra.mxu0 0.0
    %1407 = vmatprep.subr.mxu0 0.0
    %1408 = vmatpush1.msra.mxu0 0.0
    %1409 = vmatprep.subr.mxu0 0.0
    %1410 = vmatpush1.msra.mxu0 0.0
    %1411 = vmatprep.subr.mxu0 0.0
    %1412 = vmatpush1.msra.mxu0 0.0
    %1413 = vmatprep.subr.mxu0 0.0
    %1414 = vmatpush1.msra.mxu0 0.0
    %1415 = vmatprep.subr.mxu0 0.0
    %1416 = vmatpush1.msra.mxu0 0.0
    %1417 = vmatprep.subr.mxu0 0.0
    %1418 = vmatpush1.msra.mxu0 0.0
    %1419 = vmatprep.subr.mxu0 0.0
    %1420 = vmatpush1.msra.mxu0 0.0
    %1421 = vmatprep.subr.mxu0 0.0
    %1422 = vmatpush1.msra.mxu0 0.0
    %1423 = vmatprep.subr.mxu0 0.0
    %1424 = vmatpush1.msra.mxu0 0.0
    %1425 = vmatprep.subr.mxu0 0.0
    %1426 = vmatpush1.msra.mxu0 0.0
    %1427 = vmatprep.subr.mxu0 0.0
    %1428 = vmatpush1.msra.mxu0 0.0
    %1429 = vmatprep.subr.mxu0 0.0
    %1430 = vmatpush1.msra.mxu0 0.0
    %1431 = vmatprep.subr.mxu0 0.0
    %1432 = vmatpush1.msra.mxu0 0.0
    %1433 = vmatprep.subr.mxu0 0.0
    %1434 = vmatpush1.msra.mxu0 0.0
    %1435 = vmatprep.subr.mxu0 0.0
    %1436 = vmatpush1.msra.mxu0 0.0
    %1437 = vmatprep.subr.mxu0 0.0
    %1438 = vmatpush1.msra.mxu0 0.0
    %1439 = vmatprep.subr.mxu0 0.0
    %1440 = vmatpush1.msra.mxu0 0.0
    %1441 = vmatprep.subr.mxu0 0.0
    %1442 = vmatpush1.msra.mxu0 0.0
    %1443 = vmatprep.subr.mxu0 0.0
    %1444 = vmatpush1.msra.mxu0 0.0
    %1445 = vmatprep.subr.mxu0 0.0
    %1446 = vmatpush1.msra.mxu0 0.0
    %1447 = vmatprep.subr.mxu0 0.0
    %1448 = vmatpush1.msra.mxu0 0.0
    %1449 = vmatprep.subr.mxu0 0.0
    %1450 = vmatpush1.msra.mxu0 0.0
    %1451 = vmatprep.subr.mxu0 0.0
    %1452 = vmatpush1.msra.mxu0 0.0
    %1453 = vmatprep.subr.mxu0 0.0
    %1454 = vmatpush1.msra.mxu0 0.0
    %1455 = vmatprep.subr.mxu0 0.0
    %1456 = vmatpush1.msra.mxu0 0.0
    %1457 = vmatprep.subr.mxu0 0.0
    %1458 = vmatpush1.msra.mxu0 0.0
    %1459 = vmatprep.mubr.f32.mxu0 0.0
    %1460 = vmatmul.mubr.f32.gmra.mrb[0].mxu0 %v1390
    %v1461 = vpop.f32.mrb[0].mxu0
    %v1462 = vadd.f32 %v1388, %v1461
    %v1463 = vpop.f32.mrb[0].mxu0
    %1464 = vmatprep.mubr.f32.mxu0 0.0
    %1465 = vmatmul.mubr.f32.gmra.mrb[0].mxu0 %v1393
    %v1466 = vpop.f32.mrb[0].mxu0
    %v1467 = vadd.f32 %v1388, %v1466
    %v1468 = vpop.f32.mrb[0].mxu0
    %1469 = vdwg.mxu0
    %1470 = vst.msk [vmem:[#allocation7] sm:$0xff] %vm94, %v1462
    %1471 = vst.msk [vmem:[#allocation7 + $0x8] sm:$0xff] %vm94, %v1467
    // Predicated region
    $region18: #{tpu_custom_call.1} parent=1 // pred_check
      _
    $region19: #{tpu_custom_call.1} parent=1 // pred_check_branch
      %1473 = sbr.rel (0) target = $region21
    $region20: #{tpu_custom_call.1} parent=1 // pred_region
      %s1475 = ssub.s32 256, 256
      %1476 = vsyncadd [#allocation4], %s1475
      %s1477 = sshll.u32 [#allocation7], 4
      %s1478 = int_to_ptr.vmem [resolvable:$true] %s1477
      %1483 = dma.vmem_to_hbm [thread:$0]  %s1478, 256, %s2, [#allocation4], 128, 128, 8
    $region21: #{tpu_custom_call.1} parent=1 // pred_fallthru
      _
    // Predicated region
    $region22: #{tpu_custom_call.1} parent=1 // pred_check
      _
    $region23: #{tpu_custom_call.1} parent=1 // pred_check_branch
      %1485 = sbr.rel (0) target = $region25
    $region24: #{tpu_custom_call.1} parent=1 // pred_region
      %1486 = dma.done [#allocation4], 256
    $region25: #{tpu_custom_call.1} parent=1 // pred_fallthru
      _
    %1487 = vsyncpa [#allocation3], 1
    %1488 = vsyncpa [#allocation6], 1
    %1489 = vsyncpa [#allocation4], 1

</llo_original>
